<compile_context>
chip_gen: v6e
topology: v6e:2x2x1
jax: 0.10.0
libtpu: 0.0.40
codegen_flags: <defaults>
</compile_context>

<pallas_src>
import functools

import jax
import jax.numpy as jnp
from jax.experimental import pallas as pl
from jax.experimental.pallas import tpu as pltpu

LANE = 128
_VMEM_LIMIT = 32 * 1024 * 1024  # safe on v5e/v6e/v7x; tiles use only a few MiB


def _round_up(x, m):
    return (x + m - 1) // m * m


def _pad2d(x, rows, cols):
    r, c = x.shape
    return jnp.pad(x, ((0, rows - r), (0, cols - c)))


def _pick_tile(n_pad):
    for t in (512, 256, 128):
        if n_pad % t == 0:
            return t
    return 128


# ---------------------------------------------------------------------------
# Kernel 1: feature projection  XW = X @ W   (row-tiled, lane-dense output)
# ---------------------------------------------------------------------------
def _proj_kernel(x_ref, w_ref, o_ref):
    o_ref[...] = jnp.dot(
        x_ref[...], w_ref[...], preferred_element_type=jnp.float32
    ).astype(o_ref.dtype)


def _project(x, w, tile_m):
    n, f_in = x.shape
    f_out = w.shape[1]
    grid = (n // tile_m,)
    return pl.pallas_call(
        _proj_kernel,
        out_shape=jax.ShapeDtypeStruct((n, f_out), jnp.bfloat16),
        grid_spec=pltpu.PrefetchScalarGridSpec(
            num_scalar_prefetch=0,
            grid=grid,
            in_specs=[
                pl.BlockSpec((tile_m, f_in), lambda i: (i, 0)),
                pl.BlockSpec((f_in, f_out), lambda i: (0, 0)),  # resident weights
            ],
            out_specs=pl.BlockSpec((tile_m, f_out), lambda i: (i, 0)),
        ),
        compiler_params=pltpu.CompilerParams(
            dimension_semantics=("parallel",),
            vmem_limit_bytes=_VMEM_LIMIT,
        ),
        cost_estimate=pl.CostEstimate(
            flops=2 * n * f_in * f_out,
            transcendentals=0,
            bytes_accessed=int(
                x.size * x.dtype.itemsize
                + w.size * w.dtype.itemsize
                + n * f_out * 2
            ),
        ),
    )(x, w)


# ---------------------------------------------------------------------------
# Kernel 2: aggregation  OUT = A_hat @ XW + b  (optionally ReLU), tiled over
# (dst-row tiles i) x (src reduction tiles k) with an f32 VMEM accumulator.
# ---------------------------------------------------------------------------
def _make_agg_kernel(apply_relu):
    def kernel(a_ref, xw_ref, b_ref, o_ref, acc_ref):
        k = pl.program_id(1)

        @pl.when(k == 0)
        def _():
            acc_ref[...] = jnp.zeros_like(acc_ref)

        acc_ref[...] += jnp.dot(
            a_ref[...], xw_ref[...], preferred_element_type=jnp.float32
        )

        @pl.when(k == pl.num_programs(1) - 1)
        def _():
            h = acc_ref[...] + b_ref[...]          # bias only in finalize
            if apply_relu:
                h = jnp.maximum(h, 0.0)
            o_ref[...] = h.astype(o_ref.dtype)

    return kernel


def _aggregate(a, xw, b, tile_m, tile_k, *, apply_relu, out_dtype):
    n = a.shape[0]
    h = xw.shape[1]
    grid = (n // tile_m, n // tile_k)
    kernel = _make_agg_kernel(apply_relu)
    return pl.pallas_call(
        kernel,
        out_shape=jax.ShapeDtypeStruct((n, h), out_dtype),
        grid_spec=pltpu.PrefetchScalarGridSpec(
            num_scalar_prefetch=0,
            grid=grid,
            in_specs=[
                pl.BlockSpec((tile_m, tile_k), lambda i, k: (i, k)),  # A_hat tile
                pl.BlockSpec((tile_k, h), lambda i, k: (k, 0)),       # staged XW
                pl.BlockSpec((1, h), lambda i, k: (0, 0)),            # bias (resident)
            ],
            out_specs=pl.BlockSpec((tile_m, h), lambda i, k: (i, 0)),
            scratch_shapes=[pltpu.VMEM((tile_m, h), jnp.float32)],
        ),
        compiler_params=pltpu.CompilerParams(
            dimension_semantics=("parallel", "arbitrary"),
            vmem_limit_bytes=_VMEM_LIMIT,
        ),
        cost_estimate=pl.CostEstimate(
            flops=2 * n * n * h,
            transcendentals=0,
            bytes_accessed=int(
                a.size * a.dtype.itemsize
                + (n // tile_m) * xw.size * xw.dtype.itemsize
                + n * h * jnp.dtype(out_dtype).itemsize
            ),
        ),
    )(a, xw, b)


# ---------------------------------------------------------------------------
# Full model forward:  out = A @ relu(A @ (X W1) + b1) W2 + b2
# ---------------------------------------------------------------------------
@functools.partial(jax.jit, static_argnames=())
def gcn_forward(a_hat, x, w1, b1, w2, b2):
    n, f_in = x.shape
    h_dim = w1.shape[1]
    f_out = w2.shape[1]

    n_pad = _round_up(n, LANE)
    tile = _pick_tile(n_pad)
    f_in_p = _round_up(f_in, LANE)
    h_p = _round_up(h_dim, LANE)
    f_out_p = _round_up(f_out, LANE)

    # Zero-pad everything to lane-dense, 128-aligned shapes (pads contribute 0).
    a_p = _pad2d(a_hat, n_pad, n_pad).astype(jnp.bfloat16)
    x_p = _pad2d(x, n_pad, f_in_p)
    w1_p = _pad2d(w1, f_in_p, h_p)
    b1_p = _pad2d(b1.reshape(1, -1), 1, h_p)
    w2_p = _pad2d(w2, h_p, f_out_p).astype(jnp.bfloat16)
    b2_p = _pad2d(b2.reshape(1, -1), 1, f_out_p)

    # Layer 1
    xw1 = _project(x_p, w1_p, tile)                                   # bf16 [Np, Hp]
    h1 = _aggregate(a_p, xw1, b1_p, tile, tile,
                    apply_relu=True, out_dtype=jnp.bfloat16)          # bf16 [Np, Hp]
    # Layer 2
    hw2 = _project(h1, w2_p, tile)                                    # bf16 [Np, Fp]
    out = _aggregate(a_p, hw2, b2_p, tile, tile,
                     apply_relu=False, out_dtype=jnp.float32)         # f32  [Np, Fp]
    return out[:n, :f_out]


# ---------------------------------------------------------------------------
# Glue: dense normalized adjacency from edge_index (plain JAX)
# ---------------------------------------------------------------------------
def build_normalized_adjacency(edge_index, num_nodes):
    """D^{-1/2} (A + I) D^{-1/2} from a [2, E] edge_index."""
    src, dst = edge_index[0], edge_index[1]
    a = jnp.zeros((num_nodes, num_nodes), jnp.float32)
    a = a.at[dst, src].add(1.0)  # duplicate edges sum (matches gcn_norm)
    idx = jnp.arange(num_nodes)
    diag = a[idx, idx]
    # add_remaining_self_loops: only where no self-loop exists yet
    a = a.at[idx, idx].add(jnp.where(diag > 0, 0.0, 1.0))
    deg = a.sum(axis=1)
    dinv = jnp.where(deg > 0, 1.0 / jnp.sqrt(deg), 0.0)
    return dinv[:, None] * a * dinv[None, :]


def glorot(key, shape):
    fan_in, fan_out = shape
    limit = jnp.sqrt(6.0 / (fan_in + fan_out))
    return jax.random.uniform(key, shape, jnp.float32, -limit, limit)


if __name__ == "__main__":
    num_nodes = 16
    num_edges = 40
    input_dim = 8
    hidden_dim = 32
    output_dim = 16

    key = jax.random.PRNGKey(0)
    k_x, k_e1, k_e2, k_w1, k_w2 = jax.random.split(key, 5)

    x = jax.random.normal(k_x, (num_nodes, input_dim), jnp.float32)
    edge_index = jnp.stack(
        [
            jax.random.randint(k_e1, (num_edges,), 0, num_nodes),
            jax.random.randint(k_e2, (num_edges,), 0, num_nodes),
        ],
        axis=0,
    )

    w1 = glorot(k_w1, (input_dim, hidden_dim))
    b1 = jnp.zeros((hidden_dim,), jnp.float32)
    w2 = glorot(k_w2, (hidden_dim, output_dim))
    b2 = jnp.zeros((output_dim,), jnp.float32)

    a_hat = build_normalized_adjacency(edge_index, num_nodes)

    out = gcn_forward(a_hat, x, w1, b1, w2, b2)
    out = jax.block_until_ready(out)

    # Pure-f32 JAX reference (kernel uses bf16 operands -> loose tolerance).
    h_ref = jnp.maximum(a_hat @ (x @ w1) + b1[None, :], 0.0)
    out_ref = a_hat @ (h_ref @ w2) + b2[None, :]
    assert out.shape == (num_nodes, output_dim)
    max_err = float(jnp.max(jnp.abs(out - out_ref)))
    assert max_err < 3e-2, f"max abs err {max_err}"

    print("KERNEL_OK")
</pallas_src>

<mosaic_0001>
module attributes {stable_mosaic.version = 11 : i64} {
  func.func @kernel(%arg0: i32, %arg1: i32, %arg2: memref<128x128xbf16, #tpu.memory_space<vmem>>, %arg3: memref<128x128xbf16, #tpu.memory_space<vmem>>, %arg4: memref<1x128xf32, #tpu.memory_space<vmem>>, %arg5: memref<128x128xbf16, #tpu.memory_space<vmem>>, %arg6: memref<128x128xf32, #tpu.memory_space<vmem>>) attributes {dimension_semantics = [#tpu.dimension_semantics<parallel>, #tpu.dimension_semantics<arbitrary>], iteration_bounds = array<i64: 1, 1>, scalar_prefetch = 0 : i64, scratch_operands = 1 : i64, tpu.core_type = #tpu.core_type<tc>, window_params = [{transform_indices = @transform_0, window_bounds = array<i64: 128, 128>}, {transform_indices = @transform_1, window_bounds = array<i64: 128, 128>}, {pipeline_mode = #tpu.pipeline_mode<synchronous>, transform_indices = @transform_2, window_bounds = array<i64: 1, 128>}, {transform_indices = @transform_3, window_bounds = array<i64: 128, 128>}]} {
    %c0_i32 = arith.constant 0 : i32
    %0 = arith.cmpi eq, %arg1, %c0_i32 : i32
    %1 = arith.extui %0 : i1 to i32
    %c0_i32_0 = arith.constant 0 : i32
    %2 = arith.cmpi ne, %1, %c0_i32_0 : i32
    scf.if %2 {
      %cst_10 = arith.constant 0.000000e+00 : f32
      %12 = vector.broadcast %cst_10 : f32 to vector<128x128xf32>
      %c0_11 = arith.constant 0 : index
      %c0_12 = arith.constant 0 : index
      %13 = vector.load %arg6[%c0_11, %c0_12] : memref<128x128xf32, #tpu.memory_space<vmem>>, vector<128x128xf32>
      tpu.vector_store %arg6[%c0_11, %c0_12], %12 {strides = array<i32>} : memref<128x128xf32, #tpu.memory_space<vmem>>, vector<128x128xf32>,
    } else {
    }
    %c0 = arith.constant 0 : index
    %c0_1 = arith.constant 0 : index
    %3 = vector.load %arg6[%c0, %c0_1] : memref<128x128xf32, #tpu.memory_space<vmem>>, vector<128x128xf32>
    %c0_2 = arith.constant 0 : index
    %c0_3 = arith.constant 0 : index
    %4 = vector.load %arg2[%c0_2, %c0_3] : memref<128x128xbf16, #tpu.memory_space<vmem>>, vector<128x128xbf16>
    %c0_4 = arith.constant 0 : index
    %c0_5 = arith.constant 0 : index
    %5 = vector.load %arg3[%c0_4, %c0_5] : memref<128x128xbf16, #tpu.memory_space<vmem>>, vector<128x128xbf16>
    %cst = arith.constant dense<0.000000e+00> : vector<128x128xf32>
    %6 = tpu.matmul %4, %5, %cst {dimension_numbers = #tpu.dot_dimension_numbers<[1], [0], [0], [1], [0, 0, 1, 1], [], []>} : vector<128x128xbf16>, vector<128x128xbf16>, vector<128x128xf32> -> vector<128x128xf32>
    %7 = arith.addf %3, %6 : vector<128x128xf32>
    %c0_6 = arith.constant 0 : index
    %c0_7 = arith.constant 0 : index
    %8 = vector.load %arg6[%c0_6, %c0_7] : memref<128x128xf32, #tpu.memory_space<vmem>>, vector<128x128xf32>
    tpu.vector_store %arg6[%c0_6, %c0_7], %7 {strides = array<i32>} : memref<128x128xf32, #tpu.memory_space<vmem>>, vector<128x128xf32>,
    %c0_i32_8 = arith.constant 0 : i32
    %9 = arith.cmpi eq, %arg1, %c0_i32_8 : i32
    %10 = arith.extui %9 : i1 to i32
    %c0_i32_9 = arith.constant 0 : i32
    %11 = arith.cmpi ne, %10, %c0_i32_9 : i32
    scf.if %11 {
      %c0_10 = arith.constant 0 : index
      %c0_11 = arith.constant 0 : index
      %12 = vector.load %arg6[%c0_10, %c0_11] : memref<128x128xf32, #tpu.memory_space<vmem>>, vector<128x128xf32>
      %c0_12 = arith.constant 0 : index
      %c0_13 = arith.constant 0 : index
      %13 = vector.load %arg4[%c0_12, %c0_13] : memref<1x128xf32, #tpu.memory_space<vmem>>, vector<1x128xf32>
      %14 = vector.broadcast %13 : vector<1x128xf32> to vector<128x128xf32>
      %15 = arith.addf %12, %14 : vector<128x128xf32>
      %cst_14 = arith.constant 0.000000e+00 : f32
      %16 = vector.broadcast %cst_14 : f32 to vector<128x128xf32>
      %17 = arith.maximumf %15, %16 : vector<128x128xf32>
      %18 = arith.truncf %17 : vector<128x128xf32> to vector<128x128xbf16>
      %c0_15 = arith.constant 0 : index
      %c0_16 = arith.constant 0 : index
      %19 = vector.load %arg5[%c0_15, %c0_16] : memref<128x128xbf16, #tpu.memory_space<vmem>>, vector<128x128xbf16>
      tpu.vector_store %arg5[%c0_15, %c0_16], %18 {strides = array<i32>} : memref<128x128xbf16, #tpu.memory_space<vmem>>, vector<128x128xbf16>,
    } else {
    }
    return
  }
  func.func @transform_0(%arg0: i32, %arg1: i32) -> (i32, i32) {
    %c0_i32 = arith.constant 0 : i32
    return %arg0, %arg1 : i32, i32
  }
  func.func @transform_1(%arg0: i32, %arg1: i32) -> (i32, i32) {
    %c0_i32 = arith.constant 0 : i32
    %c0_i32_0 = arith.constant 0 : i32
    return %arg1, %c0_i32 : i32, i32
  }
  func.func @transform_2(%arg0: i32, %arg1: i32) -> (i32, i32) {
    %c0_i32 = arith.constant 0 : i32
    %c0_i32_0 = arith.constant 0 : i32
    %c0_i32_1 = arith.constant 0 : i32
    return %c0_i32, %c0_i32_0 : i32, i32
  }
  func.func @transform_3(%arg0: i32, %arg1: i32) -> (i32, i32) {
    %c0_i32 = arith.constant 0 : i32
    %c0_i32_0 = arith.constant 0 : i32
    return %arg0, %c0_i32 : i32, i32
  }
}

module attributes {stable_mosaic.version = 11 : i64} {
  func.func @_proj_kernel(%arg0: i32, %arg1: memref<128x128xf32, #tpu.memory_space<vmem>>, %arg2: memref<128x128xf32, #tpu.memory_space<vmem>>, %arg3: memref<128x128xbf16, #tpu.memory_space<vmem>>) attributes {dimension_semantics = [#tpu.dimension_semantics<parallel>], iteration_bounds = array<i64: 1>, scalar_prefetch = 0 : i64, scratch_operands = 0 : i64, tpu.core_type = #tpu.core_type<tc>, window_params = [{transform_indices = @transform_0, window_bounds = array<i64: 128, 128>}, {pipeline_mode = #tpu.pipeline_mode<synchronous>, transform_indices = @transform_1, window_bounds = array<i64: 128, 128>}, {transform_indices = @transform_2, window_bounds = array<i64: 128, 128>}]} {
    %c0 = arith.constant 0 : index
    %c0_0 = arith.constant 0 : index
    %0 = vector.load %arg1[%c0, %c0_0] : memref<128x128xf32, #tpu.memory_space<vmem>>, vector<128x128xf32>
    %c0_1 = arith.constant 0 : index
    %c0_2 = arith.constant 0 : index
    %1 = vector.load %arg2[%c0_1, %c0_2] : memref<128x128xf32, #tpu.memory_space<vmem>>, vector<128x128xf32>
    %cst = arith.constant dense<0.000000e+00> : vector<128x128xf32>
    %2 = tpu.matmul %0, %1, %cst {dimension_numbers = #tpu.dot_dimension_numbers<[1], [0], [0], [1], [0, 0, 1, 1], [], []>} : vector<128x128xf32>, vector<128x128xf32>, vector<128x128xf32> -> vector<128x128xf32>
    %3 = arith.truncf %2 : vector<128x128xf32> to vector<128x128xbf16>
    %c0_3 = arith.constant 0 : index
    %c0_4 = arith.constant 0 : index
    %4 = vector.load %arg3[%c0_3, %c0_4] : memref<128x128xbf16, #tpu.memory_space<vmem>>, vector<128x128xbf16>
    tpu.vector_store %arg3[%c0_3, %c0_4], %3 {strides = array<i32>} : memref<128x128xbf16, #tpu.memory_space<vmem>>, vector<128x128xbf16>,
    return
  }
  func.func @transform_0(%arg0: i32) -> (i32, i32) {
    %c0_i32 = arith.constant 0 : i32
    %c0_i32_0 = arith.constant 0 : i32
    return %arg0, %c0_i32 : i32, i32
  }
  func.func @transform_1(%arg0: i32) -> (i32, i32) {
    %c0_i32 = arith.constant 0 : i32
    %c0_i32_0 = arith.constant 0 : i32
    %c0_i32_1 = arith.constant 0 : i32
    return %c0_i32, %c0_i32_0 : i32, i32
  }
  func.func @transform_2(%arg0: i32) -> (i32, i32) {
    %c0_i32 = arith.constant 0 : i32
    %c0_i32_0 = arith.constant 0 : i32
    return %arg0, %c0_i32 : i32, i32
  }
}

module attributes {stable_mosaic.version = 11 : i64} {
  func.func @_proj_kernel(%arg0: i32, %arg1: memref<128x128xbf16, #tpu.memory_space<vmem>>, %arg2: memref<128x128xbf16, #tpu.memory_space<vmem>>, %arg3: memref<128x128xbf16, #tpu.memory_space<vmem>>) attributes {dimension_semantics = [#tpu.dimension_semantics<parallel>], iteration_bounds = array<i64: 1>, scalar_prefetch = 0 : i64, scratch_operands = 0 : i64, tpu.core_type = #tpu.core_type<tc>, window_params = [{transform_indices = @transform_0, window_bounds = array<i64: 128, 128>}, {pipeline_mode = #tpu.pipeline_mode<synchronous>, transform_indices = @transform_1, window_bounds = array<i64: 128, 128>}, {transform_indices = @transform_2, window_bounds = array<i64: 128, 128>}]} {
    %c0 = arith.constant 0 : index
    %c0_0 = arith.constant 0 : index
    %0 = vector.load %arg1[%c0, %c0_0] : memref<128x128xbf16, #tpu.memory_space<vmem>>, vector<128x128xbf16>
    %c0_1 = arith.constant 0 : index
    %c0_2 = arith.constant 0 : index
    %1 = vector.load %arg2[%c0_1, %c0_2] : memref<128x128xbf16, #tpu.memory_space<vmem>>, vector<128x128xbf16>
    %cst = arith.constant dense<0.000000e+00> : vector<128x128xf32>
    %2 = tpu.matmul %0, %1, %cst {dimension_numbers = #tpu.dot_dimension_numbers<[1], [0], [0], [1], [0, 0, 1, 1], [], []>} : vector<128x128xbf16>, vector<128x128xbf16>, vector<128x128xf32> -> vector<128x128xf32>
    %3 = arith.truncf %2 : vector<128x128xf32> to vector<128x128xbf16>
    %c0_3 = arith.constant 0 : index
    %c0_4 = arith.constant 0 : index
    %4 = vector.load %arg3[%c0_3, %c0_4] : memref<128x128xbf16, #tpu.memory_space<vmem>>, vector<128x128xbf16>
    tpu.vector_store %arg3[%c0_3, %c0_4], %3 {strides = array<i32>} : memref<128x128xbf16, #tpu.memory_space<vmem>>, vector<128x128xbf16>,
    return
  }
  func.func @transform_0(%arg0: i32) -> (i32, i32) {
    %c0_i32 = arith.constant 0 : i32
    %c0_i32_0 = arith.constant 0 : i32
    return %arg0, %c0_i32 : i32, i32
  }
  func.func @transform_1(%arg0: i32) -> (i32, i32) {
    %c0_i32 = arith.constant 0 : i32
    %c0_i32_0 = arith.constant 0 : i32
    %c0_i32_1 = arith.constant 0 : i32
    return %c0_i32, %c0_i32_0 : i32, i32
  }
  func.func @transform_2(%arg0: i32) -> (i32, i32) {
    %c0_i32 = arith.constant 0 : i32
    %c0_i32_0 = arith.constant 0 : i32
    return %arg0, %c0_i32 : i32, i32
  }
}

module attributes {stable_mosaic.version = 11 : i64} {
  func.func @kernel(%arg0: i32, %arg1: i32, %arg2: memref<128x128xbf16, #tpu.memory_space<vmem>>, %arg3: memref<128x128xbf16, #tpu.memory_space<vmem>>, %arg4: memref<1x128xf32, #tpu.memory_space<vmem>>, %arg5: memref<128x128xf32, #tpu.memory_space<vmem>>, %arg6: memref<128x128xf32, #tpu.memory_space<vmem>>) attributes {dimension_semantics = [#tpu.dimension_semantics<parallel>, #tpu.dimension_semantics<arbitrary>], iteration_bounds = array<i64: 1, 1>, scalar_prefetch = 0 : i64, scratch_operands = 1 : i64, tpu.core_type = #tpu.core_type<tc>, window_params = [{transform_indices = @transform_0, window_bounds = array<i64: 128, 128>}, {transform_indices = @transform_1, window_bounds = array<i64: 128, 128>}, {pipeline_mode = #tpu.pipeline_mode<synchronous>, transform_indices = @transform_2, window_bounds = array<i64: 1, 128>}, {transform_indices = @transform_3, window_bounds = array<i64: 128, 128>}]} {
    %c0_i32 = arith.constant 0 : i32
    %0 = arith.cmpi eq, %arg1, %c0_i32 : i32
    %1 = arith.extui %0 : i1 to i32
    %c0_i32_0 = arith.constant 0 : i32
    %2 = arith.cmpi ne, %1, %c0_i32_0 : i32
    scf.if %2 {
      %cst_10 = arith.constant 0.000000e+00 : f32
      %12 = vector.broadcast %cst_10 : f32 to vector<128x128xf32>
      %c0_11 = arith.constant 0 : index
      %c0_12 = arith.constant 0 : index
      %13 = vector.load %arg6[%c0_11, %c0_12] : memref<128x128xf32, #tpu.memory_space<vmem>>, vector<128x128xf32>
      tpu.vector_store %arg6[%c0_11, %c0_12], %12 {strides = array<i32>} : memref<128x128xf32, #tpu.memory_space<vmem>>, vector<128x128xf32>,
    } else {
    }
    %c0 = arith.constant 0 : index
    %c0_1 = arith.constant 0 : index
    %3 = vector.load %arg6[%c0, %c0_1] : memref<128x128xf32, #tpu.memory_space<vmem>>, vector<128x128xf32>
    %c0_2 = arith.constant 0 : index
    %c0_3 = arith.constant 0 : index
    %4 = vector.load %arg2[%c0_2, %c0_3] : memref<128x128xbf16, #tpu.memory_space<vmem>>, vector<128x128xbf16>
    %c0_4 = arith.constant 0 : index
    %c0_5 = arith.constant 0 : index
    %5 = vector.load %arg3[%c0_4, %c0_5] : memref<128x128xbf16, #tpu.memory_space<vmem>>, vector<128x128xbf16>
    %cst = arith.constant dense<0.000000e+00> : vector<128x128xf32>
    %6 = tpu.matmul %4, %5, %cst {dimension_numbers = #tpu.dot_dimension_numbers<[1], [0], [0], [1], [0, 0, 1, 1], [], []>} : vector<128x128xbf16>, vector<128x128xbf16>, vector<128x128xf32> -> vector<128x128xf32>
    %7 = arith.addf %3, %6 : vector<128x128xf32>
    %c0_6 = arith.constant 0 : index
    %c0_7 = arith.constant 0 : index
    %8 = vector.load %arg6[%c0_6, %c0_7] : memref<128x128xf32, #tpu.memory_space<vmem>>, vector<128x128xf32>
    tpu.vector_store %arg6[%c0_6, %c0_7], %7 {strides = array<i32>} : memref<128x128xf32, #tpu.memory_space<vmem>>, vector<128x128xf32>,
    %c0_i32_8 = arith.constant 0 : i32
    %9 = arith.cmpi eq, %arg1, %c0_i32_8 : i32
    %10 = arith.extui %9 : i1 to i32
    %c0_i32_9 = arith.constant 0 : i32
    %11 = arith.cmpi ne, %10, %c0_i32_9 : i32
    scf.if %11 {
      %c0_10 = arith.constant 0 : index
      %c0_11 = arith.constant 0 : index
      %12 = vector.load %arg6[%c0_10, %c0_11] : memref<128x128xf32, #tpu.memory_space<vmem>>, vector<128x128xf32>
      %c0_12 = arith.constant 0 : index
      %c0_13 = arith.constant 0 : index
      %13 = vector.load %arg4[%c0_12, %c0_13] : memref<1x128xf32, #tpu.memory_space<vmem>>, vector<1x128xf32>
      %14 = vector.broadcast %13 : vector<1x128xf32> to vector<128x128xf32>
      %15 = arith.addf %12, %14 : vector<128x128xf32>
      %c0_14 = arith.constant 0 : index
      %c0_15 = arith.constant 0 : index
      %16 = vector.load %arg5[%c0_14, %c0_15] : memref<128x128xf32, #tpu.memory_space<vmem>>, vector<128x128xf32>
      tpu.vector_store %arg5[%c0_14, %c0_15], %15 {strides = array<i32>} : memref<128x128xf32, #tpu.memory_space<vmem>>, vector<128x128xf32>,
    } else {
    }
    return
  }
  func.func @transform_0(%arg0: i32, %arg1: i32) -> (i32, i32) {
    %c0_i32 = arith.constant 0 : i32
    return %arg0, %arg1 : i32, i32
  }
  func.func @transform_1(%arg0: i32, %arg1: i32) -> (i32, i32) {
    %c0_i32 = arith.constant 0 : i32
    %c0_i32_0 = arith.constant 0 : i32
    return %arg1, %c0_i32 : i32, i32
  }
  func.func @transform_2(%arg0: i32, %arg1: i32) -> (i32, i32) {
    %c0_i32 = arith.constant 0 : i32
    %c0_i32_0 = arith.constant 0 : i32
    %c0_i32_1 = arith.constant 0 : i32
    return %c0_i32, %c0_i32_0 : i32, i32
  }
  func.func @transform_3(%arg0: i32, %arg1: i32) -> (i32, i32) {
    %c0_i32 = arith.constant 0 : i32
    %c0_i32_0 = arith.constant 0 : i32
    return %arg0, %c0_i32 : i32, i32
  }
}

</mosaic_0001>

<llo_original>
// kernel: gcn_forward.6
$region0: #{gcn_forward.6}
  #allocation0 [shape = 'u32[]', space=smem, size = 0x4, offset = 0x4, fixed_abs, tag = 'smem constant byte address 0x4 - core index']
  #allocation1 [shape = 'u32[144,128]{1,0:T(1,128)}', space=vmem, size = 0x12000, scoped, tag = 'internal scratch']
  %s0 = inlined_call_operand.vmem [shape: bf16[128,128], index: 0, kind: input, shape index: {}]
  %s1 = inlined_call_operand.vmem [shape: bf16[128,128], index: 1, kind: input, shape index: {}]
  %s2 = inlined_call_operand.vmem [shape: bf16[128,128], index: 2, kind: output, shape index: {}]
  %s3 = sld [smem:[#allocation0]]
  $region18: #{gcn_forward.6} parent=0
    _
  %s5 = ssub.s32 1, %s3
  %s6 = scalar_select 0, %s5, %s3
  // Predicated region
  $region2: #{gcn_forward.6} parent=0 // pred_check
    _
  $region3: #{gcn_forward.6} parent=0 // pred_check_branch
    %8 = sbr.rel (0) target = $region5
  $region4: #{gcn_forward.6} parent=0 // pred_region
    _
  $region5: #{gcn_forward.6} parent=0 // pred_fallthru
    _
  // Predicated region
  $region6: #{gcn_forward.6} parent=0 // pred_check
    _
  $region7: #{gcn_forward.6} parent=0 // pred_check_branch
    %10 = sbr.rel (0) target = $region9
  $region8: #{gcn_forward.6} parent=0 // pred_region
    _
  $region9: #{gcn_forward.6} parent=0 // pred_fallthru
    _
  %v12 = vld [vmem:[%s0] sm:$0xf]
  %v13 = vld [vmem:[%s0 + $0x4] sm:$0xf]
  %v14 = vld [vmem:[%s0 + $0x8] sm:$0xf]
  %v15 = vld [vmem:[%s0 + $0xc] sm:$0xf]
  %v16 = vld [vmem:[%s0 + $0x10] sm:$0xf]
  %v17 = vld [vmem:[%s0 + $0x14] sm:$0xf]
  %v18 = vld [vmem:[%s0 + $0x18] sm:$0xf]
  %v19 = vld [vmem:[%s0 + $0x1c] sm:$0xf]
  %v20 = vld [vmem:[%s0 + $0x20] sm:$0xf]
  %v21 = vld [vmem:[%s0 + $0x24] sm:$0xf]
  %v22 = vld [vmem:[%s0 + $0x28] sm:$0xf]
  %v23 = vld [vmem:[%s0 + $0x2c] sm:$0xf]
  %v24 = vld [vmem:[%s0 + $0x30] sm:$0xf]
  %v25 = vld [vmem:[%s0 + $0x34] sm:$0xf]
  %v26 = vld [vmem:[%s0 + $0x38] sm:$0xf]
  %v27 = vld [vmem:[%s0 + $0x3c] sm:$0xf]
  %v28 = vld [vmem:[%s1] sm:$0xf]
  %v29 = vld [vmem:[%s1 + $0x4] sm:$0xf]
  %v30 = vld [vmem:[%s1 + $0x8] sm:$0xf]
  %v31 = vld [vmem:[%s1 + $0xc] sm:$0xf]
  %v32 = vld [vmem:[%s1 + $0x10] sm:$0xf]
  %v33 = vld [vmem:[%s1 + $0x14] sm:$0xf]
  %v34 = vld [vmem:[%s1 + $0x18] sm:$0xf]
  %v35 = vld [vmem:[%s1 + $0x1c] sm:$0xf]
  %v36 = vld [vmem:[%s1 + $0x20] sm:$0xf]
  %v37 = vld [vmem:[%s1 + $0x24] sm:$0xf]
  %v38 = vld [vmem:[%s1 + $0x28] sm:$0xf]
  %v39 = vld [vmem:[%s1 + $0x2c] sm:$0xf]
  %v40 = vld [vmem:[%s1 + $0x30] sm:$0xf]
  %v41 = vld [vmem:[%s1 + $0x34] sm:$0xf]
  %v42 = vld [vmem:[%s1 + $0x38] sm:$0xf]
  %v43 = vld [vmem:[%s1 + $0x3c] sm:$0xf]
  %v60 = vunpack.c.l.b16 %v12
  %v61 = vunpack.c.l.b16 %v13
  %v62 = vunpack.c.l.b16 %v14
  %v63 = vunpack.c.l.b16 %v15
  %v64 = vunpack.c.l.b16 %v16
  %v65 = vunpack.c.l.b16 %v17
  %v66 = vunpack.c.l.b16 %v18
  %v67 = vunpack.c.l.b16 %v19
  %v68 = vunpack.c.l.b16 %v20
  %v69 = vunpack.c.l.b16 %v21
  %v70 = vunpack.c.l.b16 %v22
  %v71 = vunpack.c.l.b16 %v23
  %v72 = vunpack.c.l.b16 %v24
  %v73 = vunpack.c.l.b16 %v25
  %v74 = vunpack.c.l.b16 %v26
  %v75 = vunpack.c.l.b16 %v27
  %v76 = vpack.c.b16 %v61, %v60
  %v77 = vpack.c.b16 %v63, %v62
  %v78 = vpack.c.b16 %v65, %v64
  %v79 = vpack.c.b16 %v67, %v66
  %v80 = vpack.c.b16 %v69, %v68
  %v81 = vpack.c.b16 %v71, %v70
  %v82 = vpack.c.b16 %v73, %v72
  %v83 = vpack.c.b16 %v75, %v74
  %v108 = vunpack.c.l.b16 %v28
  %v109 = vunpack.c.l.b16 %v29
  %v110 = vunpack.c.l.b16 %v30
  %v111 = vunpack.c.l.b16 %v31
  %v112 = vunpack.c.l.b16 %v32
  %v113 = vunpack.c.l.b16 %v33
  %v114 = vunpack.c.l.b16 %v34
  %v115 = vunpack.c.l.b16 %v35
  %v116 = vunpack.c.l.b16 %v36
  %v117 = vunpack.c.l.b16 %v37
  %v118 = vunpack.c.l.b16 %v38
  %v119 = vunpack.c.l.b16 %v39
  %v120 = vunpack.c.l.b16 %v40
  %v121 = vunpack.c.l.b16 %v41
  %v122 = vunpack.c.l.b16 %v42
  %v123 = vunpack.c.l.b16 %v43
  %v124 = vpack.c.b16 %v109, %v108
  %v125 = vpack.c.b16 %v111, %v110
  %v126 = vpack.c.b16 %v113, %v112
  %v127 = vpack.c.b16 %v115, %v114
  %v128 = vpack.c.b16 %v117, %v116
  %v129 = vpack.c.b16 %v119, %v118
  %v130 = vpack.c.b16 %v121, %v120
  %v131 = vpack.c.b16 %v123, %v122
  %140 = vmatprep.subr.bf16.mxu0 0
  %141 = vmatpush1.bf16.msra.mxu0 %v131
  %142 = vmatprep.subr.bf16.mxu0 0
  %143 = vmatpush1.bf16.msra.mxu0 %v130
  %144 = vmatprep.subr.bf16.mxu0 0
  %145 = vmatpush1.bf16.msra.mxu0 %v129
  %146 = vmatprep.subr.bf16.mxu0 0
  %147 = vmatpush1.bf16.msra.mxu0 %v128
  %148 = vmatprep.subr.bf16.mxu0 0
  %149 = vmatpush1.bf16.msra.mxu0 %v127
  %150 = vmatprep.subr.bf16.mxu0 0
  %151 = vmatpush1.bf16.msra.mxu0 %v126
  %152 = vmatprep.subr.bf16.mxu0 0
  %153 = vmatpush1.bf16.msra.mxu0 %v125
  %154 = vmatprep.subr.bf16.mxu0 0
  %155 = vmatpush1.bf16.msra.mxu0 %v124
  %156 = vmatprep.subr.bf16.mxu0 0
  %157 = vmatpush2.bf16.msra.mxu0 0
  %158 = vmatprep.subr.bf16.mxu0 0
  %159 = vmatpush2.bf16.msra.mxu0 0
  %160 = vmatprep.subr.bf16.mxu0 0
  %161 = vmatpush2.bf16.msra.mxu0 0
  %162 = vmatprep.subr.bf16.mxu0 0
  %163 = vmatpush2.bf16.msra.mxu0 0
  %164 = vmatprep.subr.bf16.mxu0 0
  %165 = vmatpush2.bf16.msra.mxu0 0
  %166 = vmatprep.subr.bf16.mxu0 0
  %167 = vmatpush2.bf16.msra.mxu0 0
  %168 = vmatprep.subr.bf16.mxu0 0
  %169 = vmatpush2.bf16.msra.mxu0 0
  %170 = vmatprep.subr.bf16.mxu0 0
  %171 = vmatpush2.bf16.msra.mxu0 0
  %172 = vmatprep.mubr.bf16.mxu0 0
  %173 = vmatmul.mubr.bf16.gmra.mxu0 %v76
  %v174 = vpop.f32.mrf.mxu0
  %v175 = vadd.f32 0.0, %v174
  %v176 = vpop.f32.mrf.mxu0
  %v177 = vpop.f32.mrf.mxu0
  %v178 = vadd.f32 0.0, %v177
  %v179 = vpop.f32.mrf.mxu0
  %180 = vmatprep.mubr.bf16.mxu0 0
  %181 = vmatmul.mubr.bf16.gmra.mxu0 %v77
  %v182 = vpop.f32.mrf.mxu0
  %v183 = vadd.f32 0.0, %v182
  %v184 = vpop.f32.mrf.mxu0
  %v185 = vpop.f32.mrf.mxu0
  %v186 = vadd.f32 0.0, %v185
  %v187 = vpop.f32.mrf.mxu0
  %188 = vmatprep.mubr.bf16.mxu0 0
  %189 = vmatmul.mubr.bf16.gmra.mxu0 %v78
  %v190 = vpop.f32.mrf.mxu0
  %v191 = vadd.f32 0.0, %v190
  %v192 = vpop.f32.mrf.mxu0
  %v193 = vpop.f32.mrf.mxu0
  %v194 = vadd.f32 0.0, %v193
  %v195 = vpop.f32.mrf.mxu0
  %196 = vmatprep.mubr.bf16.mxu0 0
  %197 = vmatmul.mubr.bf16.gmra.mxu0 %v79
  %v198 = vpop.f32.mrf.mxu0
  %v199 = vadd.f32 0.0, %v198
  %v200 = vpop.f32.mrf.mxu0
  %v201 = vpop.f32.mrf.mxu0
  %v202 = vadd.f32 0.0, %v201
  %v203 = vpop.f32.mrf.mxu0
  %204 = vmatprep.mubr.bf16.mxu0 0
  %205 = vmatmul.mubr.bf16.gmra.mxu0 %v80
  %v206 = vpop.f32.mrf.mxu0
  %v207 = vadd.f32 0.0, %v206
  %v208 = vpop.f32.mrf.mxu0
  %v209 = vpop.f32.mrf.mxu0
  %v210 = vadd.f32 0.0, %v209
  %v211 = vpop.f32.mrf.mxu0
  %212 = vmatprep.mubr.bf16.mxu0 0
  %213 = vmatmul.mubr.bf16.gmra.mxu0 %v81
  %v214 = vpop.f32.mrf.mxu0
  %v215 = vadd.f32 0.0, %v214
  %v216 = vpop.f32.mrf.mxu0
  %v217 = vpop.f32.mrf.mxu0
  %v218 = vadd.f32 0.0, %v217
  %v219 = vpop.f32.mrf.mxu0
  %220 = vmatprep.mubr.bf16.mxu0 0
  %221 = vmatmul.mubr.bf16.gmra.mxu0 %v82
  %v222 = vpop.f32.mrf.mxu0
  %v223 = vadd.f32 0.0, %v222
  %v224 = vpop.f32.mrf.mxu0
  %v225 = vpop.f32.mrf.mxu0
  %v226 = vadd.f32 0.0, %v225
  %v227 = vpop.f32.mrf.mxu0
  %228 = vmatprep.mubr.bf16.mxu0 0
  %229 = vmatmul.mubr.bf16.gmra.mxu0 %v83
  %v230 = vpop.f32.mrf.mxu0
  %v231 = vadd.f32 0.0, %v230
  %v232 = vpop.f32.mrf.mxu0
  %v233 = vpop.f32.mrf.mxu0
  %v234 = vadd.f32 0.0, %v233
  %v235 = vpop.f32.mrf.mxu0
  %236 = vdwg.mxu0
  %v237 = vpack.c.bf16 %v178, %v175
  %v238 = vpack.c.bf16 %v186, %v183
  %v239 = vpack.c.bf16 %v194, %v191
  %v240 = vpack.c.bf16 %v202, %v199
  %v241 = vpack.c.bf16 %v210, %v207
  %v242 = vpack.c.bf16 %v218, %v215
  %v243 = vpack.c.bf16 %v226, %v223
  %v244 = vpack.c.bf16 %v234, %v231
  %v253 = vunpack.c.l.b16 %v237
  %v254 = vunpack.c.h.b16 %v237
  %v255 = vunpack.c.l.b16 %v238
  %v256 = vunpack.c.h.b16 %v238
  %v257 = vunpack.c.l.b16 %v239
  %v258 = vunpack.c.h.b16 %v239
  %v259 = vunpack.c.l.b16 %v240
  %v260 = vunpack.c.h.b16 %v240
  %v261 = vunpack.c.l.b16 %v241
  %v262 = vunpack.c.h.b16 %v241
  %v263 = vunpack.c.l.b16 %v242
  %v264 = vunpack.c.h.b16 %v242
  %v265 = vunpack.c.l.b16 %v243
  %v266 = vunpack.c.h.b16 %v243
  %v267 = vunpack.c.l.b16 %v244
  %v268 = vunpack.c.h.b16 %v244
  %v269 = vpack.c.b16 %v253, %v253
  %v270 = vpack.c.b16 %v254, %v254
  %v271 = vpack.c.b16 %v255, %v255
  %v272 = vpack.c.b16 %v256, %v256
  %v273 = vpack.c.b16 %v257, %v257
  %v274 = vpack.c.b16 %v258, %v258
  %v275 = vpack.c.b16 %v259, %v259
  %v276 = vpack.c.b16 %v260, %v260
  %v277 = vpack.c.b16 %v261, %v261
  %v278 = vpack.c.b16 %v262, %v262
  %v279 = vpack.c.b16 %v263, %v263
  %v280 = vpack.c.b16 %v264, %v264
  %v281 = vpack.c.b16 %v265, %v265
  %v282 = vpack.c.b16 %v266, %v266
  %v283 = vpack.c.b16 %v267, %v267
  %v284 = vpack.c.b16 %v268, %v268
  %301 = vst [vmem:[%s2] sm:$0xf] %v269
  %302 = vst [vmem:[%s2 + $0x4] sm:$0xf] %v270
  %303 = vst [vmem:[%s2 + $0x8] sm:$0xf] %v271
  %304 = vst [vmem:[%s2 + $0xc] sm:$0xf] %v272
  %305 = vst [vmem:[%s2 + $0x10] sm:$0xf] %v273
  %306 = vst [vmem:[%s2 + $0x14] sm:$0xf] %v274
  %307 = vst [vmem:[%s2 + $0x18] sm:$0xf] %v275
  %308 = vst [vmem:[%s2 + $0x1c] sm:$0xf] %v276
  %309 = vst [vmem:[%s2 + $0x20] sm:$0xf] %v277
  %310 = vst [vmem:[%s2 + $0x24] sm:$0xf] %v278
  %311 = vst [vmem:[%s2 + $0x28] sm:$0xf] %v279
  %312 = vst [vmem:[%s2 + $0x2c] sm:$0xf] %v280
  %313 = vst [vmem:[%s2 + $0x30] sm:$0xf] %v281
  %314 = vst [vmem:[%s2 + $0x34] sm:$0xf] %v282
  %315 = vst [vmem:[%s2 + $0x38] sm:$0xf] %v283
  %316 = vst [vmem:[%s2 + $0x3c] sm:$0xf] %v284
  // Predicated region
  $region10: #{gcn_forward.6} parent=0 // pred_check
    _
  $region11: #{gcn_forward.6} parent=0 // pred_check_branch
    %318 = sbr.rel (0) target = $region13
  $region12: #{gcn_forward.6} parent=0 // pred_region
    _
  $region13: #{gcn_forward.6} parent=0 // pred_fallthru
    _
  // Predicated region
  $region14: #{gcn_forward.6} parent=0 // pred_check
    _
  $region15: #{gcn_forward.6} parent=0 // pred_check_branch
    %320 = sbr.rel (0) target = $region17
  $region16: #{gcn_forward.6} parent=0 // pred_region
    _
  $region17: #{gcn_forward.6} parent=0 // pred_fallthru
    _

// kernel: gcn_forward.4
$region0: #{gcn_forward.4}
  #allocation0 [shape = 'u32[]', space=smem, size = 0x4, offset = 0x4, fixed_abs, tag = 'smem constant byte address 0x4 - core index']
  #allocation1 [shape = 'u32[144,128]{1,0:T(1,128)}', space=vmem, size = 0x12000, scoped, tag = 'internal scratch']
  %s0 = inlined_call_operand.vmem [shape: f32[128,128], index: 0, kind: input, shape index: {}]
  %s1 = inlined_call_operand.vmem [shape: f32[128,128], index: 1, kind: input, shape index: {}]
  %s2 = inlined_call_operand.vmem [shape: bf16[128,128], index: 2, kind: output, shape index: {}]
  %s3 = sld [smem:[#allocation0]]
  $region18: #{gcn_forward.4} parent=0
    _
  %s5 = ssub.s32 1, %s3
  %s6 = scalar_select 0, %s5, %s3
  // Predicated region
  $region2: #{gcn_forward.4} parent=0 // pred_check
    _
  $region3: #{gcn_forward.4} parent=0 // pred_check_branch
    %8 = sbr.rel (0) target = $region5
  $region4: #{gcn_forward.4} parent=0 // pred_region
    _
  $region5: #{gcn_forward.4} parent=0 // pred_fallthru
    _
  // Predicated region
  $region6: #{gcn_forward.4} parent=0 // pred_check
    _
  $region7: #{gcn_forward.4} parent=0 // pred_check_branch
    %10 = sbr.rel (0) target = $region9
  $region8: #{gcn_forward.4} parent=0 // pred_region
    _
  $region9: #{gcn_forward.4} parent=0 // pred_fallthru
    _
  %v11 = vld [vmem:[%s0] sm:$0xff]
  %v12 = vld [vmem:[%s0 + $0x8] sm:$0xff]
  %v13 = vld [vmem:[%s0 + $0x10] sm:$0xff]
  %v14 = vld [vmem:[%s0 + $0x18] sm:$0xff]
  %v15 = vld [vmem:[%s0 + $0x20] sm:$0xff]
  %v16 = vld [vmem:[%s0 + $0x28] sm:$0xff]
  %v17 = vld [vmem:[%s0 + $0x30] sm:$0xff]
  %v18 = vld [vmem:[%s0 + $0x38] sm:$0xff]
  %v19 = vld [vmem:[%s0 + $0x40] sm:$0xff]
  %v20 = vld [vmem:[%s0 + $0x48] sm:$0xff]
  %v21 = vld [vmem:[%s0 + $0x50] sm:$0xff]
  %v22 = vld [vmem:[%s0 + $0x58] sm:$0xff]
  %v23 = vld [vmem:[%s0 + $0x60] sm:$0xff]
  %v24 = vld [vmem:[%s0 + $0x68] sm:$0xff]
  %v25 = vld [vmem:[%s0 + $0x70] sm:$0xff]
  %v26 = vld [vmem:[%s0 + $0x78] sm:$0xff]
  %v27 = vld [vmem:[%s1] sm:$0xff]
  %v28 = vld [vmem:[%s1 + $0x8] sm:$0xff]
  %v29 = vld [vmem:[%s1 + $0x10] sm:$0xff]
  %v30 = vld [vmem:[%s1 + $0x18] sm:$0xff]
  %v31 = vld [vmem:[%s1 + $0x20] sm:$0xff]
  %v32 = vld [vmem:[%s1 + $0x28] sm:$0xff]
  %v33 = vld [vmem:[%s1 + $0x30] sm:$0xff]
  %v34 = vld [vmem:[%s1 + $0x38] sm:$0xff]
  %v35 = vld [vmem:[%s1 + $0x40] sm:$0xff]
  %v36 = vld [vmem:[%s1 + $0x48] sm:$0xff]
  %v37 = vld [vmem:[%s1 + $0x50] sm:$0xff]
  %v38 = vld [vmem:[%s1 + $0x58] sm:$0xff]
  %v39 = vld [vmem:[%s1 + $0x60] sm:$0xff]
  %v40 = vld [vmem:[%s1 + $0x68] sm:$0xff]
  %v41 = vld [vmem:[%s1 + $0x70] sm:$0xff]
  %v42 = vld [vmem:[%s1 + $0x78] sm:$0xff]
  %43 = vmatprep.subr.mxu0 0.0
  %44 = vmatpush1.msra.mxu0 %v42
  %45 = vmatprep.subr.mxu0 0.0
  %46 = vmatpush1.msra.mxu0 %v41
  %47 = vmatprep.subr.mxu0 0.0
  %48 = vmatpush1.msra.mxu0 %v40
  %49 = vmatprep.subr.mxu0 0.0
  %50 = vmatpush1.msra.mxu0 %v39
  %51 = vmatprep.subr.mxu0 0.0
  %52 = vmatpush1.msra.mxu0 %v38
  %53 = vmatprep.subr.mxu0 0.0
  %54 = vmatpush1.msra.mxu0 %v37
  %55 = vmatprep.subr.mxu0 0.0
  %56 = vmatpush1.msra.mxu0 %v36
  %57 = vmatprep.subr.mxu0 0.0
  %58 = vmatpush1.msra.mxu0 %v35
  %59 = vmatprep.subr.mxu0 0.0
  %60 = vmatpush1.msra.mxu0 %v34
  %61 = vmatprep.subr.mxu0 0.0
  %62 = vmatpush1.msra.mxu0 %v33
  %63 = vmatprep.subr.mxu0 0.0
  %64 = vmatpush1.msra.mxu0 %v32
  %65 = vmatprep.subr.mxu0 0.0
  %66 = vmatpush1.msra.mxu0 %v31
  %67 = vmatprep.subr.mxu0 0.0
  %68 = vmatpush1.msra.mxu0 %v30
  %69 = vmatprep.subr.mxu0 0.0
  %70 = vmatpush1.msra.mxu0 %v29
  %71 = vmatprep.subr.mxu0 0.0
  %72 = vmatpush1.msra.mxu0 %v28
  %73 = vmatprep.subr.mxu0 0.0
  %74 = vmatpush1.msra.mxu0 %v27
  %75 = vmatprep.subr.mxu0 0.0
  %76 = vmatpush2.msra.mxu0 0.0
  %77 = vmatprep.subr.mxu0 0.0
  %78 = vmatpush2.msra.mxu0 0.0
  %79 = vmatprep.subr.mxu0 0.0
  %80 = vmatpush2.msra.mxu0 0.0
  %81 = vmatprep.subr.mxu0 0.0
  %82 = vmatpush2.msra.mxu0 0.0
  %83 = vmatprep.subr.mxu0 0.0
  %84 = vmatpush2.msra.mxu0 0.0
  %85 = vmatprep.subr.mxu0 0.0
  %86 = vmatpush2.msra.mxu0 0.0
  %87 = vmatprep.subr.mxu0 0.0
  %88 = vmatpush2.msra.mxu0 0.0
  %89 = vmatprep.subr.mxu0 0.0
  %90 = vmatpush2.msra.mxu0 0.0
  %91 = vmatprep.subr.mxu0 0.0
  %92 = vmatpush2.msra.mxu0 0.0
  %93 = vmatprep.subr.mxu0 0.0
  %94 = vmatpush2.msra.mxu0 0.0
  %95 = vmatprep.subr.mxu0 0.0
  %96 = vmatpush2.msra.mxu0 0.0
  %97 = vmatprep.subr.mxu0 0.0
  %98 = vmatpush2.msra.mxu0 0.0
  %99 = vmatprep.subr.mxu0 0.0
  %100 = vmatpush2.msra.mxu0 0.0
  %101 = vmatprep.subr.mxu0 0.0
  %102 = vmatpush2.msra.mxu0 0.0
  %103 = vmatprep.subr.mxu0 0.0
  %104 = vmatpush2.msra.mxu0 0.0
  %105 = vmatprep.subr.mxu0 0.0
  %106 = vmatpush2.msra.mxu0 0.0
  %107 = vmatprep.mubr.f32.mxu0 0.0
  %108 = vmatmul.mubr.f32.gmra.mxu0 %v11
  %v109 = vpop.f32.mrf.mxu0
  %v110 = vadd.f32 0.0, %v109
  %v111 = vpop.f32.mrf.mxu0
  %112 = vmatprep.mubr.f32.mxu0 0.0
  %113 = vmatmul.mubr.f32.gmra.mxu0 %v12
  %v114 = vpop.f32.mrf.mxu0
  %v115 = vadd.f32 0.0, %v114
  %v116 = vpop.f32.mrf.mxu0
  %117 = vmatprep.mubr.f32.mxu0 0.0
  %118 = vmatmul.mubr.f32.gmra.mxu0 %v13
  %v119 = vpop.f32.mrf.mxu0
  %v120 = vadd.f32 0.0, %v119
  %v121 = vpop.f32.mrf.mxu0
  %122 = vmatprep.mubr.f32.mxu0 0.0
  %123 = vmatmul.mubr.f32.gmra.mxu0 %v14
  %v124 = vpop.f32.mrf.mxu0
  %v125 = vadd.f32 0.0, %v124
  %v126 = vpop.f32.mrf.mxu0
  %127 = vmatprep.mubr.f32.mxu0 0.0
  %128 = vmatmul.mubr.f32.gmra.mxu0 %v15
  %v129 = vpop.f32.mrf.mxu0
  %v130 = vadd.f32 0.0, %v129
  %v131 = vpop.f32.mrf.mxu0
  %132 = vmatprep.mubr.f32.mxu0 0.0
  %133 = vmatmul.mubr.f32.gmra.mxu0 %v16
  %v134 = vpop.f32.mrf.mxu0
  %v135 = vadd.f32 0.0, %v134
  %v136 = vpop.f32.mrf.mxu0
  %137 = vmatprep.mubr.f32.mxu0 0.0
  %138 = vmatmul.mubr.f32.gmra.mxu0 %v17
  %v139 = vpop.f32.mrf.mxu0
  %v140 = vadd.f32 0.0, %v139
  %v141 = vpop.f32.mrf.mxu0
  %142 = vmatprep.mubr.f32.mxu0 0.0
  %143 = vmatmul.mubr.f32.gmra.mxu0 %v18
  %v144 = vpop.f32.mrf.mxu0
  %v145 = vadd.f32 0.0, %v144
  %v146 = vpop.f32.mrf.mxu0
  %147 = vmatprep.mubr.f32.mxu0 0.0
  %148 = vmatmul.mubr.f32.gmra.mxu0 %v19
  %v149 = vpop.f32.mrf.mxu0
  %v150 = vadd.f32 0.0, %v149
  %v151 = vpop.f32.mrf.mxu0
  %152 = vmatprep.mubr.f32.mxu0 0.0
  %153 = vmatmul.mubr.f32.gmra.mxu0 %v20
  %v154 = vpop.f32.mrf.mxu0
  %v155 = vadd.f32 0.0, %v154
  %v156 = vpop.f32.mrf.mxu0
  %157 = vmatprep.mubr.f32.mxu0 0.0
  %158 = vmatmul.mubr.f32.gmra.mxu0 %v21
  %v159 = vpop.f32.mrf.mxu0
  %v160 = vadd.f32 0.0, %v159
  %v161 = vpop.f32.mrf.mxu0
  %162 = vmatprep.mubr.f32.mxu0 0.0
  %163 = vmatmul.mubr.f32.gmra.mxu0 %v22
  %v164 = vpop.f32.mrf.mxu0
  %v165 = vadd.f32 0.0, %v164
  %v166 = vpop.f32.mrf.mxu0
  %167 = vmatprep.mubr.f32.mxu0 0.0
  %168 = vmatmul.mubr.f32.gmra.mxu0 %v23
  %v169 = vpop.f32.mrf.mxu0
  %v170 = vadd.f32 0.0, %v169
  %v171 = vpop.f32.mrf.mxu0
  %172 = vmatprep.mubr.f32.mxu0 0.0
  %173 = vmatmul.mubr.f32.gmra.mxu0 %v24
  %v174 = vpop.f32.mrf.mxu0
  %v175 = vadd.f32 0.0, %v174
  %v176 = vpop.f32.mrf.mxu0
  %177 = vmatprep.mubr.f32.mxu0 0.0
  %178 = vmatmul.mubr.f32.gmra.mxu0 %v25
  %v179 = vpop.f32.mrf.mxu0
  %v180 = vadd.f32 0.0, %v179
  %v181 = vpop.f32.mrf.mxu0
  %182 = vmatprep.mubr.f32.mxu0 0.0
  %183 = vmatmul.mubr.f32.gmra.mxu0 %v26
  %v184 = vpop.f32.mrf.mxu0
  %v185 = vadd.f32 0.0, %v184
  %v186 = vpop.f32.mrf.mxu0
  %187 = vdwg.mxu0
  %v188 = vpack.c.bf16 %v115, %v110
  %v189 = vpack.c.bf16 %v125, %v120
  %v190 = vpack.c.bf16 %v135, %v130
  %v191 = vpack.c.bf16 %v145, %v140
  %v192 = vpack.c.bf16 %v155, %v150
  %v193 = vpack.c.bf16 %v165, %v160
  %v194 = vpack.c.bf16 %v175, %v170
  %v195 = vpack.c.bf16 %v185, %v180
  %v204 = vunpack.c.l.b16 %v188
  %v205 = vunpack.c.h.b16 %v188
  %v206 = vunpack.c.l.b16 %v189
  %v207 = vunpack.c.h.b16 %v189
  %v208 = vunpack.c.l.b16 %v190
  %v209 = vunpack.c.h.b16 %v190
  %v210 = vunpack.c.l.b16 %v191
  %v211 = vunpack.c.h.b16 %v191
  %v212 = vunpack.c.l.b16 %v192
  %v213 = vunpack.c.h.b16 %v192
  %v214 = vunpack.c.l.b16 %v193
  %v215 = vunpack.c.h.b16 %v193
  %v216 = vunpack.c.l.b16 %v194
  %v217 = vunpack.c.h.b16 %v194
  %v218 = vunpack.c.l.b16 %v195
  %v219 = vunpack.c.h.b16 %v195
  %v220 = vpack.c.b16 %v204, %v204
  %v221 = vpack.c.b16 %v205, %v205
  %v222 = vpack.c.b16 %v206, %v206
  %v223 = vpack.c.b16 %v207, %v207
  %v224 = vpack.c.b16 %v208, %v208
  %v225 = vpack.c.b16 %v209, %v209
  %v226 = vpack.c.b16 %v210, %v210
  %v227 = vpack.c.b16 %v211, %v211
  %v228 = vpack.c.b16 %v212, %v212
  %v229 = vpack.c.b16 %v213, %v213
  %v230 = vpack.c.b16 %v214, %v214
  %v231 = vpack.c.b16 %v215, %v215
  %v232 = vpack.c.b16 %v216, %v216
  %v233 = vpack.c.b16 %v217, %v217
  %v234 = vpack.c.b16 %v218, %v218
  %v235 = vpack.c.b16 %v219, %v219
  %252 = vst [vmem:[%s2] sm:$0xf] %v220
  %253 = vst [vmem:[%s2 + $0x4] sm:$0xf] %v221
  %254 = vst [vmem:[%s2 + $0x8] sm:$0xf] %v222
  %255 = vst [vmem:[%s2 + $0xc] sm:$0xf] %v223
  %256 = vst [vmem:[%s2 + $0x10] sm:$0xf] %v224
  %257 = vst [vmem:[%s2 + $0x14] sm:$0xf] %v225
  %258 = vst [vmem:[%s2 + $0x18] sm:$0xf] %v226
  %259 = vst [vmem:[%s2 + $0x1c] sm:$0xf] %v227
  %260 = vst [vmem:[%s2 + $0x20] sm:$0xf] %v228
  %261 = vst [vmem:[%s2 + $0x24] sm:$0xf] %v229
  %262 = vst [vmem:[%s2 + $0x28] sm:$0xf] %v230
  %263 = vst [vmem:[%s2 + $0x2c] sm:$0xf] %v231
  %264 = vst [vmem:[%s2 + $0x30] sm:$0xf] %v232
  %265 = vst [vmem:[%s2 + $0x34] sm:$0xf] %v233
  %266 = vst [vmem:[%s2 + $0x38] sm:$0xf] %v234
  %267 = vst [vmem:[%s2 + $0x3c] sm:$0xf] %v235
  // Predicated region
  $region10: #{gcn_forward.4} parent=0 // pred_check
    _
  $region11: #{gcn_forward.4} parent=0 // pred_check_branch
    %269 = sbr.rel (0) target = $region13
  $region12: #{gcn_forward.4} parent=0 // pred_region
    _
  $region13: #{gcn_forward.4} parent=0 // pred_fallthru
    _
  // Predicated region
  $region14: #{gcn_forward.4} parent=0 // pred_check
    _
  $region15: #{gcn_forward.4} parent=0 // pred_check_branch
    %271 = sbr.rel (0) target = $region17
  $region16: #{gcn_forward.4} parent=0 // pred_region
    _
  $region17: #{gcn_forward.4} parent=0 // pred_fallthru
    _

// kernel: gcn_forward.5
$region0: #{gcn_forward.5}
  #allocation0 [shape = 'u32[]', space=smem, size = 0x4, offset = 0x4, fixed_abs, tag = 'smem constant byte address 0x4 - core index']
  #allocation1 [shape = 'u32[144,128]{1,0:T(1,128)}', space=vmem, size = 0x12000, scoped, tag = 'internal scratch']
  #allocation2 [shape = 'f32[128,128]{1,0:T(8,128)}', space=vmem, size = 0x10000, scoped, tag = 'scratch operand']
  %s0 = inlined_call_operand.vmem [shape: bf16[128,128], index: 0, kind: input, shape index: {}]
  %s1 = inlined_call_operand.vmem [shape: bf16[128,128], index: 1, kind: input, shape index: {}]
  %s2 = inlined_call_operand.vmem [shape: f32[1,128], index: 2, kind: input, shape index: {}]
  %s3 = inlined_call_operand.vmem [shape: bf16[128,128], index: 3, kind: output, shape index: {}]
  %s4 = sld [smem:[#allocation0]]
  $region30: #{gcn_forward.5} parent=0
    _
  %s6 = ssub.s32 1, %s4
  %s7 = scalar_select 0, %s6, %s4
  // Predicated region
  $region2: #{gcn_forward.5} parent=0 // pred_check
    _
  $region3: #{gcn_forward.5} parent=0 // pred_check_branch
    %9 = sbr.rel (0) target = $region5
  $region4: #{gcn_forward.5} parent=0 // pred_region
    _
  $region5: #{gcn_forward.5} parent=0 // pred_fallthru
    _
  // Predicated region
  $region6: #{gcn_forward.5} parent=0 // pred_check
    _
  $region7: #{gcn_forward.5} parent=0 // pred_check_branch
    %11 = sbr.rel (0) target = $region9
  $region8: #{gcn_forward.5} parent=0 // pred_region
    _
  $region9: #{gcn_forward.5} parent=0 // pred_fallthru
    _
  // Predicated region
  $region10: #{gcn_forward.5} parent=0 // pred_check
    _
  $region11: #{gcn_forward.5} parent=0 // pred_check_branch
    %13 = sbr.rel (0) target = $region13
  $region12: #{gcn_forward.5} parent=0 // pred_region
    _
  $region13: #{gcn_forward.5} parent=0 // pred_fallthru
    _
  %p15 = scmp.eq.s32.totalorder 0, 0
  // Predicated region
  $region14: #{gcn_forward.5} parent=0 // pred_check
    %p16 = pneg %p15
  $region15: #{gcn_forward.5} parent=0 // pred_check_branch
    %18 = sbr.rel (%p16) target = $region17
  $region16: #{gcn_forward.5} parent=0 // pred_region
    %19 = vst [vmem:[#allocation2] sm:$0xff] 0.0
    %20 = vst [vmem:[#allocation2 + $0x8] sm:$0xff] 0.0
    %21 = vst [vmem:[#allocation2 + $0x10] sm:$0xff] 0.0
    %22 = vst [vmem:[#allocation2 + $0x18] sm:$0xff] 0.0
    %23 = vst [vmem:[#allocation2 + $0x20] sm:$0xff] 0.0
    %24 = vst [vmem:[#allocation2 + $0x28] sm:$0xff] 0.0
    %25 = vst [vmem:[#allocation2 + $0x30] sm:$0xff] 0.0
    %26 = vst [vmem:[#allocation2 + $0x38] sm:$0xff] 0.0
    %27 = vst [vmem:[#allocation2 + $0x40] sm:$0xff] 0.0
    %28 = vst [vmem:[#allocation2 + $0x48] sm:$0xff] 0.0
    %29 = vst [vmem:[#allocation2 + $0x50] sm:$0xff] 0.0
    %30 = vst [vmem:[#allocation2 + $0x58] sm:$0xff] 0.0
    %31 = vst [vmem:[#allocation2 + $0x60] sm:$0xff] 0.0
    %32 = vst [vmem:[#allocation2 + $0x68] sm:$0xff] 0.0
    %33 = vst [vmem:[#allocation2 + $0x70] sm:$0xff] 0.0
    %34 = vst [vmem:[#allocation2 + $0x78] sm:$0xff] 0.0
  $region17: #{gcn_forward.5} parent=0 // pred_fallthru
    _
  %v35 = vld [vmem:[#allocation2] sm:$0xff]
  %v36 = vld [vmem:[#allocation2 + $0x8] sm:$0xff]
  %v37 = vld [vmem:[#allocation2 + $0x10] sm:$0xff]
  %v38 = vld [vmem:[#allocation2 + $0x18] sm:$0xff]
  %v39 = vld [vmem:[#allocation2 + $0x20] sm:$0xff]
  %v40 = vld [vmem:[#allocation2 + $0x28] sm:$0xff]
  %v41 = vld [vmem:[#allocation2 + $0x30] sm:$0xff]
  %v42 = vld [vmem:[#allocation2 + $0x38] sm:$0xff]
  %v43 = vld [vmem:[#allocation2 + $0x40] sm:$0xff]
  %v44 = vld [vmem:[#allocation2 + $0x48] sm:$0xff]
  %v45 = vld [vmem:[#allocation2 + $0x50] sm:$0xff]
  %v46 = vld [vmem:[#allocation2 + $0x58] sm:$0xff]
  %v47 = vld [vmem:[#allocation2 + $0x60] sm:$0xff]
  %v48 = vld [vmem:[#allocation2 + $0x68] sm:$0xff]
  %v49 = vld [vmem:[#allocation2 + $0x70] sm:$0xff]
  %v50 = vld [vmem:[#allocation2 + $0x78] sm:$0xff]
  %v51 = vld [vmem:[%s0] sm:$0xf]
  %v52 = vld [vmem:[%s0 + $0x4] sm:$0xf]
  %v53 = vld [vmem:[%s0 + $0x8] sm:$0xf]
  %v54 = vld [vmem:[%s0 + $0xc] sm:$0xf]
  %v55 = vld [vmem:[%s0 + $0x10] sm:$0xf]
  %v56 = vld [vmem:[%s0 + $0x14] sm:$0xf]
  %v57 = vld [vmem:[%s0 + $0x18] sm:$0xf]
  %v58 = vld [vmem:[%s0 + $0x1c] sm:$0xf]
  %v59 = vld [vmem:[%s0 + $0x20] sm:$0xf]
  %v60 = vld [vmem:[%s0 + $0x24] sm:$0xf]
  %v61 = vld [vmem:[%s0 + $0x28] sm:$0xf]
  %v62 = vld [vmem:[%s0 + $0x2c] sm:$0xf]
  %v63 = vld [vmem:[%s0 + $0x30] sm:$0xf]
  %v64 = vld [vmem:[%s0 + $0x34] sm:$0xf]
  %v65 = vld [vmem:[%s0 + $0x38] sm:$0xf]
  %v66 = vld [vmem:[%s0 + $0x3c] sm:$0xf]
  %v67 = vld [vmem:[%s1] sm:$0xf]
  %v68 = vld [vmem:[%s1 + $0x4] sm:$0xf]
  %v69 = vld [vmem:[%s1 + $0x8] sm:$0xf]
  %v70 = vld [vmem:[%s1 + $0xc] sm:$0xf]
  %v71 = vld [vmem:[%s1 + $0x10] sm:$0xf]
  %v72 = vld [vmem:[%s1 + $0x14] sm:$0xf]
  %v73 = vld [vmem:[%s1 + $0x18] sm:$0xf]
  %v74 = vld [vmem:[%s1 + $0x1c] sm:$0xf]
  %v75 = vld [vmem:[%s1 + $0x20] sm:$0xf]
  %v76 = vld [vmem:[%s1 + $0x24] sm:$0xf]
  %v77 = vld [vmem:[%s1 + $0x28] sm:$0xf]
  %v78 = vld [vmem:[%s1 + $0x2c] sm:$0xf]
  %v79 = vld [vmem:[%s1 + $0x30] sm:$0xf]
  %v80 = vld [vmem:[%s1 + $0x34] sm:$0xf]
  %v81 = vld [vmem:[%s1 + $0x38] sm:$0xf]
  %v82 = vld [vmem:[%s1 + $0x3c] sm:$0xf]
  %v99 = vunpack.c.l.b16 %v51
  %v100 = vunpack.c.l.b16 %v52
  %v101 = vunpack.c.l.b16 %v53
  %v102 = vunpack.c.l.b16 %v54
  %v103 = vunpack.c.l.b16 %v55
  %v104 = vunpack.c.l.b16 %v56
  %v105 = vunpack.c.l.b16 %v57
  %v106 = vunpack.c.l.b16 %v58
  %v107 = vunpack.c.l.b16 %v59
  %v108 = vunpack.c.l.b16 %v60
  %v109 = vunpack.c.l.b16 %v61
  %v110 = vunpack.c.l.b16 %v62
  %v111 = vunpack.c.l.b16 %v63
  %v112 = vunpack.c.l.b16 %v64
  %v113 = vunpack.c.l.b16 %v65
  %v114 = vunpack.c.l.b16 %v66
  %v115 = vpack.c.b16 %v100, %v99
  %v116 = vpack.c.b16 %v102, %v101
  %v117 = vpack.c.b16 %v104, %v103
  %v118 = vpack.c.b16 %v106, %v105
  %v119 = vpack.c.b16 %v108, %v107
  %v120 = vpack.c.b16 %v110, %v109
  %v121 = vpack.c.b16 %v112, %v111
  %v122 = vpack.c.b16 %v114, %v113
  %v147 = vunpack.c.l.b16 %v67
  %v148 = vunpack.c.l.b16 %v68
  %v149 = vunpack.c.l.b16 %v69
  %v150 = vunpack.c.l.b16 %v70
  %v151 = vunpack.c.l.b16 %v71
  %v152 = vunpack.c.l.b16 %v72
  %v153 = vunpack.c.l.b16 %v73
  %v154 = vunpack.c.l.b16 %v74
  %v155 = vunpack.c.l.b16 %v75
  %v156 = vunpack.c.l.b16 %v76
  %v157 = vunpack.c.l.b16 %v77
  %v158 = vunpack.c.l.b16 %v78
  %v159 = vunpack.c.l.b16 %v79
  %v160 = vunpack.c.l.b16 %v80
  %v161 = vunpack.c.l.b16 %v81
  %v162 = vunpack.c.l.b16 %v82
  %v163 = vpack.c.b16 %v148, %v147
  %v164 = vpack.c.b16 %v150, %v149
  %v165 = vpack.c.b16 %v152, %v151
  %v166 = vpack.c.b16 %v154, %v153
  %v167 = vpack.c.b16 %v156, %v155
  %v168 = vpack.c.b16 %v158, %v157
  %v169 = vpack.c.b16 %v160, %v159
  %v170 = vpack.c.b16 %v162, %v161
  %179 = vmatprep.subr.bf16.mxu0 0
  %180 = vmatpush1.bf16.msra.mxu0 %v170
  %181 = vmatprep.subr.bf16.mxu0 0
  %182 = vmatpush1.bf16.msra.mxu0 %v169
  %183 = vmatprep.subr.bf16.mxu0 0
  %184 = vmatpush1.bf16.msra.mxu0 %v168
  %185 = vmatprep.subr.bf16.mxu0 0
  %186 = vmatpush1.bf16.msra.mxu0 %v167
  %187 = vmatprep.subr.bf16.mxu0 0
  %188 = vmatpush1.bf16.msra.mxu0 %v166
  %189 = vmatprep.subr.bf16.mxu0 0
  %190 = vmatpush1.bf16.msra.mxu0 %v165
  %191 = vmatprep.subr.bf16.mxu0 0
  %192 = vmatpush1.bf16.msra.mxu0 %v164
  %193 = vmatprep.subr.bf16.mxu0 0
  %194 = vmatpush1.bf16.msra.mxu0 %v163
  %195 = vmatprep.subr.bf16.mxu0 0
  %196 = vmatpush2.bf16.msra.mxu0 0
  %197 = vmatprep.subr.bf16.mxu0 0
  %198 = vmatpush2.bf16.msra.mxu0 0
  %199 = vmatprep.subr.bf16.mxu0 0
  %200 = vmatpush2.bf16.msra.mxu0 0
  %201 = vmatprep.subr.bf16.mxu0 0
  %202 = vmatpush2.bf16.msra.mxu0 0
  %203 = vmatprep.subr.bf16.mxu0 0
  %204 = vmatpush2.bf16.msra.mxu0 0
  %205 = vmatprep.subr.bf16.mxu0 0
  %206 = vmatpush2.bf16.msra.mxu0 0
  %207 = vmatprep.subr.bf16.mxu0 0
  %208 = vmatpush2.bf16.msra.mxu0 0
  %209 = vmatprep.subr.bf16.mxu0 0
  %210 = vmatpush2.bf16.msra.mxu0 0
  %211 = vmatprep.mubr.bf16.mxu0 0
  %212 = vmatmul.mubr.bf16.gmra.mxu0 %v115
  %v213 = vpop.f32.mrf.mxu0
  %v214 = vadd.f32 0.0, %v213
  %v215 = vpop.f32.mrf.mxu0
  %v216 = vpop.f32.mrf.mxu0
  %v217 = vadd.f32 0.0, %v216
  %v218 = vpop.f32.mrf.mxu0
  %219 = vmatprep.mubr.bf16.mxu0 0
  %220 = vmatmul.mubr.bf16.gmra.mxu0 %v116
  %v221 = vpop.f32.mrf.mxu0
  %v222 = vadd.f32 0.0, %v221
  %v223 = vpop.f32.mrf.mxu0
  %v224 = vpop.f32.mrf.mxu0
  %v225 = vadd.f32 0.0, %v224
  %v226 = vpop.f32.mrf.mxu0
  %227 = vmatprep.mubr.bf16.mxu0 0
  %228 = vmatmul.mubr.bf16.gmra.mxu0 %v117
  %v229 = vpop.f32.mrf.mxu0
  %v230 = vadd.f32 0.0, %v229
  %v231 = vpop.f32.mrf.mxu0
  %v232 = vpop.f32.mrf.mxu0
  %v233 = vadd.f32 0.0, %v232
  %v234 = vpop.f32.mrf.mxu0
  %235 = vmatprep.mubr.bf16.mxu0 0
  %236 = vmatmul.mubr.bf16.gmra.mxu0 %v118
  %v237 = vpop.f32.mrf.mxu0
  %v238 = vadd.f32 0.0, %v237
  %v239 = vpop.f32.mrf.mxu0
  %v240 = vpop.f32.mrf.mxu0
  %v241 = vadd.f32 0.0, %v240
  %v242 = vpop.f32.mrf.mxu0
  %243 = vmatprep.mubr.bf16.mxu0 0
  %244 = vmatmul.mubr.bf16.gmra.mxu0 %v119
  %v245 = vpop.f32.mrf.mxu0
  %v246 = vadd.f32 0.0, %v245
  %v247 = vpop.f32.mrf.mxu0
  %v248 = vpop.f32.mrf.mxu0
  %v249 = vadd.f32 0.0, %v248
  %v250 = vpop.f32.mrf.mxu0
  %251 = vmatprep.mubr.bf16.mxu0 0
  %252 = vmatmul.mubr.bf16.gmra.mxu0 %v120
  %v253 = vpop.f32.mrf.mxu0
  %v254 = vadd.f32 0.0, %v253
  %v255 = vpop.f32.mrf.mxu0
  %v256 = vpop.f32.mrf.mxu0
  %v257 = vadd.f32 0.0, %v256
  %v258 = vpop.f32.mrf.mxu0
  %259 = vmatprep.mubr.bf16.mxu0 0
  %260 = vmatmul.mubr.bf16.gmra.mxu0 %v121
  %v261 = vpop.f32.mrf.mxu0
  %v262 = vadd.f32 0.0, %v261
  %v263 = vpop.f32.mrf.mxu0
  %v264 = vpop.f32.mrf.mxu0
  %v265 = vadd.f32 0.0, %v264
  %v266 = vpop.f32.mrf.mxu0
  %267 = vmatprep.mubr.bf16.mxu0 0
  %268 = vmatmul.mubr.bf16.gmra.mxu0 %v122
  %v269 = vpop.f32.mrf.mxu0
  %v270 = vadd.f32 0.0, %v269
  %v271 = vpop.f32.mrf.mxu0
  %v272 = vpop.f32.mrf.mxu0
  %v273 = vadd.f32 0.0, %v272
  %v274 = vpop.f32.mrf.mxu0
  %275 = vdwg.mxu0
  %v276 = vadd.f32 %v35, %v214
  %v277 = vadd.f32 %v36, %v217
  %v278 = vadd.f32 %v37, %v222
  %v279 = vadd.f32 %v38, %v225
  %v280 = vadd.f32 %v39, %v230
  %v281 = vadd.f32 %v40, %v233
  %v282 = vadd.f32 %v41, %v238
  %v283 = vadd.f32 %v42, %v241
  %v284 = vadd.f32 %v43, %v246
  %v285 = vadd.f32 %v44, %v249
  %v286 = vadd.f32 %v45, %v254
  %v287 = vadd.f32 %v46, %v257
  %v288 = vadd.f32 %v47, %v262
  %v289 = vadd.f32 %v48, %v265
  %v290 = vadd.f32 %v49, %v270
  %v291 = vadd.f32 %v50, %v273
  %292 = vst [vmem:[#allocation2] sm:$0xff] %v276
  %293 = vst [vmem:[#allocation2 + $0x8] sm:$0xff] %v277
  %294 = vst [vmem:[#allocation2 + $0x10] sm:$0xff] %v278
  %295 = vst [vmem:[#allocation2 + $0x18] sm:$0xff] %v279
  %296 = vst [vmem:[#allocation2 + $0x20] sm:$0xff] %v280
  %297 = vst [vmem:[#allocation2 + $0x28] sm:$0xff] %v281
  %298 = vst [vmem:[#allocation2 + $0x30] sm:$0xff] %v282
  %299 = vst [vmem:[#allocation2 + $0x38] sm:$0xff] %v283
  %300 = vst [vmem:[#allocation2 + $0x40] sm:$0xff] %v284
  %301 = vst [vmem:[#allocation2 + $0x48] sm:$0xff] %v285
  %302 = vst [vmem:[#allocation2 + $0x50] sm:$0xff] %v286
  %303 = vst [vmem:[#allocation2 + $0x58] sm:$0xff] %v287
  %304 = vst [vmem:[#allocation2 + $0x60] sm:$0xff] %v288
  %305 = vst [vmem:[#allocation2 + $0x68] sm:$0xff] %v289
  %306 = vst [vmem:[#allocation2 + $0x70] sm:$0xff] %v290
  %307 = vst [vmem:[#allocation2 + $0x78] sm:$0xff] %v291
  // Predicated region
  $region18: #{gcn_forward.5} parent=0 // pred_check
    %p308 = pneg %p15
  $region19: #{gcn_forward.5} parent=0 // pred_check_branch
    %310 = sbr.rel (%p308) target = $region21
  $region20: #{gcn_forward.5} parent=0 // pred_region
    %v311 = vld [vmem:[#allocation2] sm:$0xff]
    %v312 = vld [vmem:[#allocation2 + $0x8] sm:$0xff]
    %v313 = vld [vmem:[#allocation2 + $0x10] sm:$0xff]
    %v314 = vld [vmem:[#allocation2 + $0x18] sm:$0xff]
    %v315 = vld [vmem:[#allocation2 + $0x20] sm:$0xff]
    %v316 = vld [vmem:[#allocation2 + $0x28] sm:$0xff]
    %v317 = vld [vmem:[#allocation2 + $0x30] sm:$0xff]
    %v318 = vld [vmem:[#allocation2 + $0x38] sm:$0xff]
    %v319 = vld [vmem:[#allocation2 + $0x40] sm:$0xff]
    %v320 = vld [vmem:[#allocation2 + $0x48] sm:$0xff]
    %v321 = vld [vmem:[#allocation2 + $0x50] sm:$0xff]
    %v322 = vld [vmem:[#allocation2 + $0x58] sm:$0xff]
    %v323 = vld [vmem:[#allocation2 + $0x60] sm:$0xff]
    %v324 = vld [vmem:[#allocation2 + $0x68] sm:$0xff]
    %v325 = vld [vmem:[#allocation2 + $0x70] sm:$0xff]
    %v326 = vld [vmem:[#allocation2 + $0x78] sm:$0xff]
    %v327 = vld [vmem:[%s2] sm:$0x1]
    %v329 = vlaneseq
    %v330 = vshrl.u32 %v329, 7
    %v331 = vsub.s32 0, %v330
    %v332 = vrot.slane %v327, %v331
    %v334 = vadd.f32 %v311, %v332
    %v335 = vadd.f32 %v312, %v332
    %v336 = vadd.f32 %v313, %v332
    %v337 = vadd.f32 %v314, %v332
    %v338 = vadd.f32 %v315, %v332
    %v339 = vadd.f32 %v316, %v332
    %v340 = vadd.f32 %v317, %v332
    %v341 = vadd.f32 %v318, %v332
    %v342 = vadd.f32 %v319, %v332
    %v343 = vadd.f32 %v320, %v332
    %v344 = vadd.f32 %v321, %v332
    %v345 = vadd.f32 %v322, %v332
    %v346 = vadd.f32 %v323, %v332
    %v347 = vadd.f32 %v324, %v332
    %v348 = vadd.f32 %v325, %v332
    %v349 = vadd.f32 %v326, %v332
    %v350 = vmax.f32 %v334, 0.0
    %v351 = vmax.f32 %v335, 0.0
    %v352 = vmax.f32 %v336, 0.0
    %v353 = vmax.f32 %v337, 0.0
    %v354 = vmax.f32 %v338, 0.0
    %v355 = vmax.f32 %v339, 0.0
    %v356 = vmax.f32 %v340, 0.0
    %v357 = vmax.f32 %v341, 0.0
    %v358 = vmax.f32 %v342, 0.0
    %v359 = vmax.f32 %v343, 0.0
    %v360 = vmax.f32 %v344, 0.0
    %v361 = vmax.f32 %v345, 0.0
    %v362 = vmax.f32 %v346, 0.0
    %v363 = vmax.f32 %v347, 0.0
    %v364 = vmax.f32 %v348, 0.0
    %v365 = vmax.f32 %v349, 0.0
    %v366 = vpack.c.bf16 %v351, %v350
    %v367 = vpack.c.bf16 %v353, %v352
    %v368 = vpack.c.bf16 %v355, %v354
    %v369 = vpack.c.bf16 %v357, %v356
    %v370 = vpack.c.bf16 %v359, %v358
    %v371 = vpack.c.bf16 %v361, %v360
    %v372 = vpack.c.bf16 %v363, %v362
    %v373 = vpack.c.bf16 %v365, %v364
    %v382 = vunpack.c.l.b16 %v366
    %v383 = vunpack.c.h.b16 %v366
    %v384 = vunpack.c.l.b16 %v367
    %v385 = vunpack.c.h.b16 %v367
    %v386 = vunpack.c.l.b16 %v368
    %v387 = vunpack.c.h.b16 %v368
    %v388 = vunpack.c.l.b16 %v369
    %v389 = vunpack.c.h.b16 %v369
    %v390 = vunpack.c.l.b16 %v370
    %v391 = vunpack.c.h.b16 %v370
    %v392 = vunpack.c.l.b16 %v371
    %v393 = vunpack.c.h.b16 %v371
    %v394 = vunpack.c.l.b16 %v372
    %v395 = vunpack.c.h.b16 %v372
    %v396 = vunpack.c.l.b16 %v373
    %v397 = vunpack.c.h.b16 %v373
    %v398 = vpack.c.b16 %v382, %v382
    %v399 = vpack.c.b16 %v383, %v383
    %v400 = vpack.c.b16 %v384, %v384
    %v401 = vpack.c.b16 %v385, %v385
    %v402 = vpack.c.b16 %v386, %v386
    %v403 = vpack.c.b16 %v387, %v387
    %v404 = vpack.c.b16 %v388, %v388
    %v405 = vpack.c.b16 %v389, %v389
    %v406 = vpack.c.b16 %v390, %v390
    %v407 = vpack.c.b16 %v391, %v391
    %v408 = vpack.c.b16 %v392, %v392
    %v409 = vpack.c.b16 %v393, %v393
    %v410 = vpack.c.b16 %v394, %v394
    %v411 = vpack.c.b16 %v395, %v395
    %v412 = vpack.c.b16 %v396, %v396
    %v413 = vpack.c.b16 %v397, %v397
    %430 = vst [vmem:[%s3] sm:$0xf] %v398
    %431 = vst [vmem:[%s3 + $0x4] sm:$0xf] %v399
    %432 = vst [vmem:[%s3 + $0x8] sm:$0xf] %v400
    %433 = vst [vmem:[%s3 + $0xc] sm:$0xf] %v401
    %434 = vst [vmem:[%s3 + $0x10] sm:$0xf] %v402
    %435 = vst [vmem:[%s3 + $0x14] sm:$0xf] %v403
    %436 = vst [vmem:[%s3 + $0x18] sm:$0xf] %v404
    %437 = vst [vmem:[%s3 + $0x1c] sm:$0xf] %v405
    %438 = vst [vmem:[%s3 + $0x20] sm:$0xf] %v406
    %439 = vst [vmem:[%s3 + $0x24] sm:$0xf] %v407
    %440 = vst [vmem:[%s3 + $0x28] sm:$0xf] %v408
    %441 = vst [vmem:[%s3 + $0x2c] sm:$0xf] %v409
    %442 = vst [vmem:[%s3 + $0x30] sm:$0xf] %v410
    %443 = vst [vmem:[%s3 + $0x34] sm:$0xf] %v411
    %444 = vst [vmem:[%s3 + $0x38] sm:$0xf] %v412
    %445 = vst [vmem:[%s3 + $0x3c] sm:$0xf] %v413
  $region21: #{gcn_forward.5} parent=0 // pred_fallthru
    _
  // Predicated region
  $region22: #{gcn_forward.5} parent=0 // pred_check
    _
  $region23: #{gcn_forward.5} parent=0 // pred_check_branch
    %447 = sbr.rel (0) target = $region25
  $region24: #{gcn_forward.5} parent=0 // pred_region
    _
  $region25: #{gcn_forward.5} parent=0 // pred_fallthru
    _
  // Predicated region
  $region26: #{gcn_forward.5} parent=0 // pred_check
    _
  $region27: #{gcn_forward.5} parent=0 // pred_check_branch
    %449 = sbr.rel (0) target = $region29
  $region28: #{gcn_forward.5} parent=0 // pred_region
    _
  $region29: #{gcn_forward.5} parent=0 // pred_fallthru
    _

// kernel: gcn_forward.7
$region0: #{gcn_forward.7}
  #allocation0 [shape = 'u32[]', space=smem, size = 0x4, offset = 0x4, fixed_abs, tag = 'smem constant byte address 0x4 - core index']
  #allocation1 [shape = 'u32[144,128]{1,0:T(1,128)}', space=vmem, size = 0x12000, scoped, tag = 'internal scratch']
  #allocation2 [shape = 'f32[128,128]{1,0:T(8,128)}', space=vmem, size = 0x10000, scoped, tag = 'scratch operand']
  %s0 = inlined_call_operand.vmem [shape: bf16[128,128], index: 0, kind: input, shape index: {}]
  %s1 = inlined_call_operand.vmem [shape: bf16[128,128], index: 1, kind: input, shape index: {}]
  %s2 = inlined_call_operand.vmem [shape: f32[1,128], index: 2, kind: input, shape index: {}]
  %s3 = inlined_call_operand.vmem [shape: f32[128,128], index: 3, kind: output, shape index: {}]
  %s4 = sld [smem:[#allocation0]]
  $region30: #{gcn_forward.7} parent=0
    _
  %s6 = ssub.s32 1, %s4
  %s7 = scalar_select 0, %s6, %s4
  // Predicated region
  $region2: #{gcn_forward.7} parent=0 // pred_check
    _
  $region3: #{gcn_forward.7} parent=0 // pred_check_branch
    %9 = sbr.rel (0) target = $region5
  $region4: #{gcn_forward.7} parent=0 // pred_region
    _
  $region5: #{gcn_forward.7} parent=0 // pred_fallthru
    _
  // Predicated region
  $region6: #{gcn_forward.7} parent=0 // pred_check
    _
  $region7: #{gcn_forward.7} parent=0 // pred_check_branch
    %11 = sbr.rel (0) target = $region9
  $region8: #{gcn_forward.7} parent=0 // pred_region
    _
  $region9: #{gcn_forward.7} parent=0 // pred_fallthru
    _
  // Predicated region
  $region10: #{gcn_forward.7} parent=0 // pred_check
    _
  $region11: #{gcn_forward.7} parent=0 // pred_check_branch
    %13 = sbr.rel (0) target = $region13
  $region12: #{gcn_forward.7} parent=0 // pred_region
    _
  $region13: #{gcn_forward.7} parent=0 // pred_fallthru
    _
  %p15 = scmp.eq.s32.totalorder 0, 0
  // Predicated region
  $region14: #{gcn_forward.7} parent=0 // pred_check
    %p16 = pneg %p15
  $region15: #{gcn_forward.7} parent=0 // pred_check_branch
    %18 = sbr.rel (%p16) target = $region17
  $region16: #{gcn_forward.7} parent=0 // pred_region
    %19 = vst [vmem:[#allocation2] sm:$0xff] 0.0
    %20 = vst [vmem:[#allocation2 + $0x8] sm:$0xff] 0.0
    %21 = vst [vmem:[#allocation2 + $0x10] sm:$0xff] 0.0
    %22 = vst [vmem:[#allocation2 + $0x18] sm:$0xff] 0.0
    %23 = vst [vmem:[#allocation2 + $0x20] sm:$0xff] 0.0
    %24 = vst [vmem:[#allocation2 + $0x28] sm:$0xff] 0.0
    %25 = vst [vmem:[#allocation2 + $0x30] sm:$0xff] 0.0
    %26 = vst [vmem:[#allocation2 + $0x38] sm:$0xff] 0.0
    %27 = vst [vmem:[#allocation2 + $0x40] sm:$0xff] 0.0
    %28 = vst [vmem:[#allocation2 + $0x48] sm:$0xff] 0.0
    %29 = vst [vmem:[#allocation2 + $0x50] sm:$0xff] 0.0
    %30 = vst [vmem:[#allocation2 + $0x58] sm:$0xff] 0.0
    %31 = vst [vmem:[#allocation2 + $0x60] sm:$0xff] 0.0
    %32 = vst [vmem:[#allocation2 + $0x68] sm:$0xff] 0.0
    %33 = vst [vmem:[#allocation2 + $0x70] sm:$0xff] 0.0
    %34 = vst [vmem:[#allocation2 + $0x78] sm:$0xff] 0.0
  $region17: #{gcn_forward.7} parent=0 // pred_fallthru
    _
  %v35 = vld [vmem:[#allocation2] sm:$0xff]
  %v36 = vld [vmem:[#allocation2 + $0x8] sm:$0xff]
  %v37 = vld [vmem:[#allocation2 + $0x10] sm:$0xff]
  %v38 = vld [vmem:[#allocation2 + $0x18] sm:$0xff]
  %v39 = vld [vmem:[#allocation2 + $0x20] sm:$0xff]
  %v40 = vld [vmem:[#allocation2 + $0x28] sm:$0xff]
  %v41 = vld [vmem:[#allocation2 + $0x30] sm:$0xff]
  %v42 = vld [vmem:[#allocation2 + $0x38] sm:$0xff]
  %v43 = vld [vmem:[#allocation2 + $0x40] sm:$0xff]
  %v44 = vld [vmem:[#allocation2 + $0x48] sm:$0xff]
  %v45 = vld [vmem:[#allocation2 + $0x50] sm:$0xff]
  %v46 = vld [vmem:[#allocation2 + $0x58] sm:$0xff]
  %v47 = vld [vmem:[#allocation2 + $0x60] sm:$0xff]
  %v48 = vld [vmem:[#allocation2 + $0x68] sm:$0xff]
  %v49 = vld [vmem:[#allocation2 + $0x70] sm:$0xff]
  %v50 = vld [vmem:[#allocation2 + $0x78] sm:$0xff]
  %v51 = vld [vmem:[%s0] sm:$0xf]
  %v52 = vld [vmem:[%s0 + $0x4] sm:$0xf]
  %v53 = vld [vmem:[%s0 + $0x8] sm:$0xf]
  %v54 = vld [vmem:[%s0 + $0xc] sm:$0xf]
  %v55 = vld [vmem:[%s0 + $0x10] sm:$0xf]
  %v56 = vld [vmem:[%s0 + $0x14] sm:$0xf]
  %v57 = vld [vmem:[%s0 + $0x18] sm:$0xf]
  %v58 = vld [vmem:[%s0 + $0x1c] sm:$0xf]
  %v59 = vld [vmem:[%s0 + $0x20] sm:$0xf]
  %v60 = vld [vmem:[%s0 + $0x24] sm:$0xf]
  %v61 = vld [vmem:[%s0 + $0x28] sm:$0xf]
  %v62 = vld [vmem:[%s0 + $0x2c] sm:$0xf]
  %v63 = vld [vmem:[%s0 + $0x30] sm:$0xf]
  %v64 = vld [vmem:[%s0 + $0x34] sm:$0xf]
  %v65 = vld [vmem:[%s0 + $0x38] sm:$0xf]
  %v66 = vld [vmem:[%s0 + $0x3c] sm:$0xf]
  %v67 = vld [vmem:[%s1] sm:$0xf]
  %v68 = vld [vmem:[%s1 + $0x4] sm:$0xf]
  %v69 = vld [vmem:[%s1 + $0x8] sm:$0xf]
  %v70 = vld [vmem:[%s1 + $0xc] sm:$0xf]
  %v71 = vld [vmem:[%s1 + $0x10] sm:$0xf]
  %v72 = vld [vmem:[%s1 + $0x14] sm:$0xf]
  %v73 = vld [vmem:[%s1 + $0x18] sm:$0xf]
  %v74 = vld [vmem:[%s1 + $0x1c] sm:$0xf]
  %v75 = vld [vmem:[%s1 + $0x20] sm:$0xf]
  %v76 = vld [vmem:[%s1 + $0x24] sm:$0xf]
  %v77 = vld [vmem:[%s1 + $0x28] sm:$0xf]
  %v78 = vld [vmem:[%s1 + $0x2c] sm:$0xf]
  %v79 = vld [vmem:[%s1 + $0x30] sm:$0xf]
  %v80 = vld [vmem:[%s1 + $0x34] sm:$0xf]
  %v81 = vld [vmem:[%s1 + $0x38] sm:$0xf]
  %v82 = vld [vmem:[%s1 + $0x3c] sm:$0xf]
  %v99 = vunpack.c.l.b16 %v51
  %v100 = vunpack.c.l.b16 %v52
  %v101 = vunpack.c.l.b16 %v53
  %v102 = vunpack.c.l.b16 %v54
  %v103 = vunpack.c.l.b16 %v55
  %v104 = vunpack.c.l.b16 %v56
  %v105 = vunpack.c.l.b16 %v57
  %v106 = vunpack.c.l.b16 %v58
  %v107 = vunpack.c.l.b16 %v59
  %v108 = vunpack.c.l.b16 %v60
  %v109 = vunpack.c.l.b16 %v61
  %v110 = vunpack.c.l.b16 %v62
  %v111 = vunpack.c.l.b16 %v63
  %v112 = vunpack.c.l.b16 %v64
  %v113 = vunpack.c.l.b16 %v65
  %v114 = vunpack.c.l.b16 %v66
  %v115 = vpack.c.b16 %v100, %v99
  %v116 = vpack.c.b16 %v102, %v101
  %v117 = vpack.c.b16 %v104, %v103
  %v118 = vpack.c.b16 %v106, %v105
  %v119 = vpack.c.b16 %v108, %v107
  %v120 = vpack.c.b16 %v110, %v109
  %v121 = vpack.c.b16 %v112, %v111
  %v122 = vpack.c.b16 %v114, %v113
  %v147 = vunpack.c.l.b16 %v67
  %v148 = vunpack.c.l.b16 %v68
  %v149 = vunpack.c.l.b16 %v69
  %v150 = vunpack.c.l.b16 %v70
  %v151 = vunpack.c.l.b16 %v71
  %v152 = vunpack.c.l.b16 %v72
  %v153 = vunpack.c.l.b16 %v73
  %v154 = vunpack.c.l.b16 %v74
  %v155 = vunpack.c.l.b16 %v75
  %v156 = vunpack.c.l.b16 %v76
  %v157 = vunpack.c.l.b16 %v77
  %v158 = vunpack.c.l.b16 %v78
  %v159 = vunpack.c.l.b16 %v79
  %v160 = vunpack.c.l.b16 %v80
  %v161 = vunpack.c.l.b16 %v81
  %v162 = vunpack.c.l.b16 %v82
  %v163 = vpack.c.b16 %v148, %v147
  %v164 = vpack.c.b16 %v150, %v149
  %v165 = vpack.c.b16 %v152, %v151
  %v166 = vpack.c.b16 %v154, %v153
  %v167 = vpack.c.b16 %v156, %v155
  %v168 = vpack.c.b16 %v158, %v157
  %v169 = vpack.c.b16 %v160, %v159
  %v170 = vpack.c.b16 %v162, %v161
  %179 = vmatprep.subr.bf16.mxu0 0
  %180 = vmatpush1.bf16.msra.mxu0 %v170
  %181 = vmatprep.subr.bf16.mxu0 0
  %182 = vmatpush1.bf16.msra.mxu0 %v169
  %183 = vmatprep.subr.bf16.mxu0 0
  %184 = vmatpush1.bf16.msra.mxu0 %v168
  %185 = vmatprep.subr.bf16.mxu0 0
  %186 = vmatpush1.bf16.msra.mxu0 %v167
  %187 = vmatprep.subr.bf16.mxu0 0
  %188 = vmatpush1.bf16.msra.mxu0 %v166
  %189 = vmatprep.subr.bf16.mxu0 0
  %190 = vmatpush1.bf16.msra.mxu0 %v165
  %191 = vmatprep.subr.bf16.mxu0 0
  %192 = vmatpush1.bf16.msra.mxu0 %v164
  %193 = vmatprep.subr.bf16.mxu0 0
  %194 = vmatpush1.bf16.msra.mxu0 %v163
  %195 = vmatprep.subr.bf16.mxu0 0
  %196 = vmatpush2.bf16.msra.mxu0 0
  %197 = vmatprep.subr.bf16.mxu0 0
  %198 = vmatpush2.bf16.msra.mxu0 0
  %199 = vmatprep.subr.bf16.mxu0 0
  %200 = vmatpush2.bf16.msra.mxu0 0
  %201 = vmatprep.subr.bf16.mxu0 0
  %202 = vmatpush2.bf16.msra.mxu0 0
  %203 = vmatprep.subr.bf16.mxu0 0
  %204 = vmatpush2.bf16.msra.mxu0 0
  %205 = vmatprep.subr.bf16.mxu0 0
  %206 = vmatpush2.bf16.msra.mxu0 0
  %207 = vmatprep.subr.bf16.mxu0 0
  %208 = vmatpush2.bf16.msra.mxu0 0
  %209 = vmatprep.subr.bf16.mxu0 0
  %210 = vmatpush2.bf16.msra.mxu0 0
  %211 = vmatprep.mubr.bf16.mxu0 0
  %212 = vmatmul.mubr.bf16.gmra.mxu0 %v115
  %v213 = vpop.f32.mrf.mxu0
  %v214 = vadd.f32 0.0, %v213
  %v215 = vpop.f32.mrf.mxu0
  %v216 = vpop.f32.mrf.mxu0
  %v217 = vadd.f32 0.0, %v216
  %v218 = vpop.f32.mrf.mxu0
  %219 = vmatprep.mubr.bf16.mxu0 0
  %220 = vmatmul.mubr.bf16.gmra.mxu0 %v116
  %v221 = vpop.f32.mrf.mxu0
  %v222 = vadd.f32 0.0, %v221
  %v223 = vpop.f32.mrf.mxu0
  %v224 = vpop.f32.mrf.mxu0
  %v225 = vadd.f32 0.0, %v224
  %v226 = vpop.f32.mrf.mxu0
  %227 = vmatprep.mubr.bf16.mxu0 0
  %228 = vmatmul.mubr.bf16.gmra.mxu0 %v117
  %v229 = vpop.f32.mrf.mxu0
  %v230 = vadd.f32 0.0, %v229
  %v231 = vpop.f32.mrf.mxu0
  %v232 = vpop.f32.mrf.mxu0
  %v233 = vadd.f32 0.0, %v232
  %v234 = vpop.f32.mrf.mxu0
  %235 = vmatprep.mubr.bf16.mxu0 0
  %236 = vmatmul.mubr.bf16.gmra.mxu0 %v118
  %v237 = vpop.f32.mrf.mxu0
  %v238 = vadd.f32 0.0, %v237
  %v239 = vpop.f32.mrf.mxu0
  %v240 = vpop.f32.mrf.mxu0
  %v241 = vadd.f32 0.0, %v240
  %v242 = vpop.f32.mrf.mxu0
  %243 = vmatprep.mubr.bf16.mxu0 0
  %244 = vmatmul.mubr.bf16.gmra.mxu0 %v119
  %v245 = vpop.f32.mrf.mxu0
  %v246 = vadd.f32 0.0, %v245
  %v247 = vpop.f32.mrf.mxu0
  %v248 = vpop.f32.mrf.mxu0
  %v249 = vadd.f32 0.0, %v248
  %v250 = vpop.f32.mrf.mxu0
  %251 = vmatprep.mubr.bf16.mxu0 0
  %252 = vmatmul.mubr.bf16.gmra.mxu0 %v120
  %v253 = vpop.f32.mrf.mxu0
  %v254 = vadd.f32 0.0, %v253
  %v255 = vpop.f32.mrf.mxu0
  %v256 = vpop.f32.mrf.mxu0
  %v257 = vadd.f32 0.0, %v256
  %v258 = vpop.f32.mrf.mxu0
  %259 = vmatprep.mubr.bf16.mxu0 0
  %260 = vmatmul.mubr.bf16.gmra.mxu0 %v121
  %v261 = vpop.f32.mrf.mxu0
  %v262 = vadd.f32 0.0, %v261
  %v263 = vpop.f32.mrf.mxu0
  %v264 = vpop.f32.mrf.mxu0
  %v265 = vadd.f32 0.0, %v264
  %v266 = vpop.f32.mrf.mxu0
  %267 = vmatprep.mubr.bf16.mxu0 0
  %268 = vmatmul.mubr.bf16.gmra.mxu0 %v122
  %v269 = vpop.f32.mrf.mxu0
  %v270 = vadd.f32 0.0, %v269
  %v271 = vpop.f32.mrf.mxu0
  %v272 = vpop.f32.mrf.mxu0
  %v273 = vadd.f32 0.0, %v272
  %v274 = vpop.f32.mrf.mxu0
  %275 = vdwg.mxu0
  %v276 = vadd.f32 %v35, %v214
  %v277 = vadd.f32 %v36, %v217
  %v278 = vadd.f32 %v37, %v222
  %v279 = vadd.f32 %v38, %v225
  %v280 = vadd.f32 %v39, %v230
  %v281 = vadd.f32 %v40, %v233
  %v282 = vadd.f32 %v41, %v238
  %v283 = vadd.f32 %v42, %v241
  %v284 = vadd.f32 %v43, %v246
  %v285 = vadd.f32 %v44, %v249
  %v286 = vadd.f32 %v45, %v254
  %v287 = vadd.f32 %v46, %v257
  %v288 = vadd.f32 %v47, %v262
  %v289 = vadd.f32 %v48, %v265
  %v290 = vadd.f32 %v49, %v270
  %v291 = vadd.f32 %v50, %v273
  %292 = vst [vmem:[#allocation2] sm:$0xff] %v276
  %293 = vst [vmem:[#allocation2 + $0x8] sm:$0xff] %v277
  %294 = vst [vmem:[#allocation2 + $0x10] sm:$0xff] %v278
  %295 = vst [vmem:[#allocation2 + $0x18] sm:$0xff] %v279
  %296 = vst [vmem:[#allocation2 + $0x20] sm:$0xff] %v280
  %297 = vst [vmem:[#allocation2 + $0x28] sm:$0xff] %v281
  %298 = vst [vmem:[#allocation2 + $0x30] sm:$0xff] %v282
  %299 = vst [vmem:[#allocation2 + $0x38] sm:$0xff] %v283
  %300 = vst [vmem:[#allocation2 + $0x40] sm:$0xff] %v284
  %301 = vst [vmem:[#allocation2 + $0x48] sm:$0xff] %v285
  %302 = vst [vmem:[#allocation2 + $0x50] sm:$0xff] %v286
  %303 = vst [vmem:[#allocation2 + $0x58] sm:$0xff] %v287
  %304 = vst [vmem:[#allocation2 + $0x60] sm:$0xff] %v288
  %305 = vst [vmem:[#allocation2 + $0x68] sm:$0xff] %v289
  %306 = vst [vmem:[#allocation2 + $0x70] sm:$0xff] %v290
  %307 = vst [vmem:[#allocation2 + $0x78] sm:$0xff] %v291
  // Predicated region
  $region18: #{gcn_forward.7} parent=0 // pred_check
    %p308 = pneg %p15
  $region19: #{gcn_forward.7} parent=0 // pred_check_branch
    %310 = sbr.rel (%p308) target = $region21
  $region20: #{gcn_forward.7} parent=0 // pred_region
    %v311 = vld [vmem:[#allocation2] sm:$0xff]
    %v312 = vld [vmem:[#allocation2 + $0x8] sm:$0xff]
    %v313 = vld [vmem:[#allocation2 + $0x10] sm:$0xff]
    %v314 = vld [vmem:[#allocation2 + $0x18] sm:$0xff]
    %v315 = vld [vmem:[#allocation2 + $0x20] sm:$0xff]
    %v316 = vld [vmem:[#allocation2 + $0x28] sm:$0xff]
    %v317 = vld [vmem:[#allocation2 + $0x30] sm:$0xff]
    %v318 = vld [vmem:[#allocation2 + $0x38] sm:$0xff]
    %v319 = vld [vmem:[#allocation2 + $0x40] sm:$0xff]
    %v320 = vld [vmem:[#allocation2 + $0x48] sm:$0xff]
    %v321 = vld [vmem:[#allocation2 + $0x50] sm:$0xff]
    %v322 = vld [vmem:[#allocation2 + $0x58] sm:$0xff]
    %v323 = vld [vmem:[#allocation2 + $0x60] sm:$0xff]
    %v324 = vld [vmem:[#allocation2 + $0x68] sm:$0xff]
    %v325 = vld [vmem:[#allocation2 + $0x70] sm:$0xff]
    %v326 = vld [vmem:[#allocation2 + $0x78] sm:$0xff]
    %v327 = vld [vmem:[%s2] sm:$0x1]
    %v329 = vlaneseq
    %v330 = vshrl.u32 %v329, 7
    %v331 = vsub.s32 0, %v330
    %v332 = vrot.slane %v327, %v331
    %v334 = vadd.f32 %v311, %v332
    %v335 = vadd.f32 %v312, %v332
    %v336 = vadd.f32 %v313, %v332
    %v337 = vadd.f32 %v314, %v332
    %v338 = vadd.f32 %v315, %v332
    %v339 = vadd.f32 %v316, %v332
    %v340 = vadd.f32 %v317, %v332
    %v341 = vadd.f32 %v318, %v332
    %v342 = vadd.f32 %v319, %v332
    %v343 = vadd.f32 %v320, %v332
    %v344 = vadd.f32 %v321, %v332
    %v345 = vadd.f32 %v322, %v332
    %v346 = vadd.f32 %v323, %v332
    %v347 = vadd.f32 %v324, %v332
    %v348 = vadd.f32 %v325, %v332
    %v349 = vadd.f32 %v326, %v332
    %350 = vst [vmem:[%s3] sm:$0xff] %v334
    %351 = vst [vmem:[%s3 + $0x8] sm:$0xff] %v335
    %352 = vst [vmem:[%s3 + $0x10] sm:$0xff] %v336
    %353 = vst [vmem:[%s3 + $0x18] sm:$0xff] %v337
    %354 = vst [vmem:[%s3 + $0x20] sm:$0xff] %v338
    %355 = vst [vmem:[%s3 + $0x28] sm:$0xff] %v339
    %356 = vst [vmem:[%s3 + $0x30] sm:$0xff] %v340
    %357 = vst [vmem:[%s3 + $0x38] sm:$0xff] %v341
    %358 = vst [vmem:[%s3 + $0x40] sm:$0xff] %v342
    %359 = vst [vmem:[%s3 + $0x48] sm:$0xff] %v343
    %360 = vst [vmem:[%s3 + $0x50] sm:$0xff] %v344
    %361 = vst [vmem:[%s3 + $0x58] sm:$0xff] %v345
    %362 = vst [vmem:[%s3 + $0x60] sm:$0xff] %v346
    %363 = vst [vmem:[%s3 + $0x68] sm:$0xff] %v347
    %364 = vst [vmem:[%s3 + $0x70] sm:$0xff] %v348
    %365 = vst [vmem:[%s3 + $0x78] sm:$0xff] %v349
  $region21: #{gcn_forward.7} parent=0 // pred_fallthru
    _
  // Predicated region
  $region22: #{gcn_forward.7} parent=0 // pred_check
    _
  $region23: #{gcn_forward.7} parent=0 // pred_check_branch
    %367 = sbr.rel (0) target = $region25
  $region24: #{gcn_forward.7} parent=0 // pred_region
    _
  $region25: #{gcn_forward.7} parent=0 // pred_fallthru
    _
  // Predicated region
  $region26: #{gcn_forward.7} parent=0 // pred_check
    _
  $region27: #{gcn_forward.7} parent=0 // pred_check_branch
    %369 = sbr.rel (0) target = $region29
  $region28: #{gcn_forward.7} parent=0 // pred_region
    _
  $region29: #{gcn_forward.7} parent=0 // pred_fallthru
    _

</llo_original>
